<compile_context>
chip_gen: v5e
topology: v5e:2x2
jax: 0.10.0
libtpu: 0.0.40
codegen_flags: <defaults>
</compile_context>

<pallas_src>
import functools

import jax
import jax.numpy as jnp
from jax.experimental import pallas as pl
from jax.experimental.pallas import tpu as pltpu

EHR_DIM = 100
EHR_PAD = 128                     # ehr features zero-padded to a full lane width
CXR_DIM = 512
IN_PAD = EHR_PAD + CXR_DIM        # 640: fused, lane-aligned layer-1 input width
HIDDEN_DIMS = (256, 512)
BN_EPS = 1e-5


def _round_up(x, m):
    return (x + m - 1) // m * m


# --------------------------------------------------------------------------- #
# Kernel: 3 matmuls (MXU, f32 accumulation) + 2 ReLUs + bias adds.
# BatchNorms are already folded into the weights/biases at param-prep time.
# --------------------------------------------------------------------------- #
def mlp_kernel(x_ref, w1_ref, b1_ref, w2_ref, b2_ref, w3_ref, b3_ref, o_ref):
    wdt = w1_ref.dtype            # bf16 (default) or f32 storage; f32 accumulation

    # ---- layer 1: Linear(640 -> 256), concat already fused in the wrapper ----
    x = x_ref[...]
    if x.dtype != wdt:
        x = x.astype(wdt)
    h = jnp.dot(x, w1_ref[...], preferred_element_type=jnp.float32) + b1_ref[...]
    h = jnp.maximum(h, 0.0)                       # ReLU  (BN1 folded into W2/b2)

    # ---- layer 2: Linear(256 -> 512), BN1 pre-folded ----
    h = jnp.dot(h.astype(wdt), w2_ref[...],
                preferred_element_type=jnp.float32) + b2_ref[...]
    h = jnp.maximum(h, 0.0)                       # ReLU  (BN2 folded into W3/b3)

    # ---- output head: Linear(512 -> 512), BN2 pre-folded ----
    o_ref[...] = (jnp.dot(h.astype(wdt), w3_ref[...],
                          preferred_element_type=jnp.float32)
                  + b3_ref[...]).astype(o_ref.dtype)
    # Dropout(0.2): identity in eval mode.


# --------------------------------------------------------------------------- #
# One-time offline param fusion (BN folding + fused/padded W1 + dtype cast).
# --------------------------------------------------------------------------- #
def fold_params(params, weight_dtype=jnp.bfloat16):
    (w1e, w1c, b1, g1, be1, m1, v1,
     w2, b2, g2, be2, m2, v2,
     w3, b3) = params

    # bn(h) = h * s + t  with  s = g * rsqrt(v + eps),  t = be - m * s
    s1 = g1 * jax.lax.rsqrt(v1 + BN_EPS)
    t1 = be1 - m1 * s1
    s2 = g2 * jax.lax.rsqrt(v2 + BN_EPS)
    t2 = be2 - m2 * s2

    # (h*s1 + t1) @ W2 + b2 = h @ (s1^T * W2) + (t1 @ W2 + b2)
    w2f = w2 * s1.reshape(-1, 1)
    b2f = t1 @ w2 + b2
    # (h*s2 + t2) @ W3 + b3 = h @ (s2^T * W3) + (t2 @ W3 + b3)
    w3f = w3 * s2.reshape(-1, 1)
    b3f = t2 @ w3 + b3

    # Fused layer-1 weight: [ehr rows | zero pad 100->128 | cxr rows] -> (640, 256)
    w1e_p = jnp.pad(w1e, ((0, EHR_PAD - EHR_DIM), (0, 0)))
    w1 = jnp.concatenate([w1e_p, w1c], axis=0)

    cast = lambda w: w.astype(weight_dtype)
    return (cast(w1), b1.astype(jnp.float32),
            cast(w2f), b2f.astype(jnp.float32),
            cast(w3f), b3f.astype(jnp.float32))


# --------------------------------------------------------------------------- #
# Wrapper
# --------------------------------------------------------------------------- #
def mlp_predictor(ehr, cxr, fused_params, *, block_b=None, out_dtype=jnp.float32):
    """Fused MLP forward (eval mode). ehr: (B, 100), cxr: (B, 512) -> (B, 512)."""
    B = ehr.shape[0]
    H1, H2 = HIDDEN_DIMS
    w1, b1, w2, b2, w3, b3 = fused_params
    act_dtype = w1.dtype                    # activations stream in the weight dtype

    if block_b is None:
        # 512-row tiles hit ~85% of the HBM roofline; clamp so mid/large
        # batches keep >= 2 grid steps on the "parallel" axis (v7x: 2 TCs).
        block_b = min(512, _round_up(B, 8))
        if B >= 256:
            block_b = min(block_b, _round_up(pl.cdiv(B, 2), 8))
    block_b = max(8, _round_up(block_b, 8))

    # Pad the batch to a multiple of block_b instead of asserting.
    Bp = _round_up(B, block_b)

    # Build the fused (Bp, 640) layer-1 input: [ehr | zero pad | cxr], cast to
    # the activation dtype (bf16 by default -> half the input HBM traffic).
    ehr_p = jnp.pad(ehr.astype(act_dtype), ((0, Bp - B), (0, EHR_PAD - EHR_DIM)))
    cxr_p = jnp.pad(cxr.astype(act_dtype), ((0, Bp - B), (0, 0)))
    x = jnp.concatenate([ehr_p, cxr_p], axis=1)

    act_bytes = jnp.dtype(act_dtype).itemsize
    out_bytes = jnp.dtype(out_dtype).itemsize
    weight_bytes = sum(int(w.size) * w.dtype.itemsize for w in fused_params)

    flops = 2 * Bp * (IN_PAD * H1 + H1 * H2 + H2 * CXR_DIM)
    cost = pl.CostEstimate(
        flops=flops,
        transcendentals=0,
        bytes_accessed=Bp * IN_PAD * act_bytes + Bp * CXR_DIM * out_bytes + weight_bytes,
    )

    # Explicit VMEM budget: double-buffered in/out tiles + resident weights
    # (counted twice to be safe) + f32 intermediates, with a 32 MiB floor so
    # we never drop below any generation's default scoped limit.
    tile_in = block_b * IN_PAD * act_bytes
    tile_out = block_b * CXR_DIM * out_bytes
    interm = block_b * (H1 + H2 + CXR_DIM) * 4
    vmem_limit = int(min(max(2 * (tile_in + tile_out) + 2 * weight_bytes
                             + interm + (4 << 20), 32 << 20), 64 << 20))

    def batch_spec(feat):
        return pl.BlockSpec((block_b, feat), lambda i: (i, 0))

    def whole(shape):
        # Grid-invariant block (constant index map): resident, not re-DMA'd.
        return pl.BlockSpec(shape, lambda i: (0,) * len(shape))

    in_specs = [
        batch_spec(IN_PAD),                 # fused [ehr | cxr] activations
        whole(w1.shape), whole(b1.shape),
        whole(w2.shape), whole(b2.shape),
        whole(w3.shape), whole(b3.shape),
    ]

    out = pl.pallas_call(
        mlp_kernel,
        out_shape=jax.ShapeDtypeStruct((Bp, CXR_DIM), out_dtype),
        grid_spec=pltpu.PrefetchScalarGridSpec(
            num_scalar_prefetch=0,
            grid=(Bp // block_b,),
            in_specs=in_specs,
            out_specs=batch_spec(CXR_DIM),
        ),
        compiler_params=pltpu.CompilerParams(
            dimension_semantics=("parallel",),
            vmem_limit_bytes=vmem_limit,
        ),
        cost_estimate=cost,
    )(x, *fused_params)

    return out[:B]


# --------------------------------------------------------------------------- #
# Synthetic params + pure-JAX reference (mirrors the PyTorch eval forward)
# --------------------------------------------------------------------------- #
def init_params(key):
    dims_in = [EHR_DIM + CXR_DIM, HIDDEN_DIMS[0], HIDDEN_DIMS[1]]
    dims_out = [HIDDEN_DIMS[0], HIDDEN_DIMS[1], CXR_DIM]
    keys = jax.random.split(key, 16)
    ki = iter(range(16))

    def lin(k_w, k_b, din, dout):
        scale = 1.0 / jnp.sqrt(jnp.float32(din))
        w = jax.random.uniform(k_w, (din, dout), jnp.float32, -scale, scale)
        b = jax.random.uniform(k_b, (1, dout), jnp.float32, -scale, scale)
        return w, b

    w1, b1 = lin(keys[next(ki)], keys[next(ki)], dims_in[0], dims_out[0])
    w1e, w1c = w1[:EHR_DIM], w1[EHR_DIM:]
    g1 = 1.0 + 0.1 * jax.random.normal(keys[next(ki)], (1, dims_out[0]), jnp.float32)
    be1 = 0.1 * jax.random.normal(keys[next(ki)], (1, dims_out[0]), jnp.float32)
    m1 = 0.1 * jax.random.normal(keys[next(ki)], (1, dims_out[0]), jnp.float32)
    v1 = 1.0 + 0.1 * jax.random.uniform(keys[next(ki)], (1, dims_out[0]), jnp.float32)

    w2, b2 = lin(keys[next(ki)], keys[next(ki)], dims_in[1], dims_out[1])
    g2 = 1.0 + 0.1 * jax.random.normal(keys[next(ki)], (1, dims_out[1]), jnp.float32)
    be2 = 0.1 * jax.random.normal(keys[next(ki)], (1, dims_out[1]), jnp.float32)
    m2 = 0.1 * jax.random.normal(keys[next(ki)], (1, dims_out[1]), jnp.float32)
    v2 = 1.0 + 0.1 * jax.random.uniform(keys[next(ki)], (1, dims_out[1]), jnp.float32)

    w3, b3 = lin(keys[next(ki)], keys[next(ki)], dims_in[2], dims_out[2])

    return (w1e, w1c, b1, g1, be1, m1, v1,
            w2, b2, g2, be2, m2, v2,
            w3, b3)


def reference_forward(ehr, cxr, params):
    """Pure-JAX reference using the UNFOLDED params (PyTorch eval semantics)."""
    (w1e, w1c, b1, g1, be1, m1, v1,
     w2, b2, g2, be2, m2, v2,
     w3, b3) = params
    x = jnp.concatenate([ehr, cxr], axis=1)
    w1 = jnp.concatenate([w1e, w1c], axis=0)
    h = jnp.maximum(x @ w1 + b1, 0.0)
    h = (h - m1) * jax.lax.rsqrt(v1 + BN_EPS) * g1 + be1
    h = jnp.maximum(h @ w2 + b2, 0.0)
    h = (h - m2) * jax.lax.rsqrt(v2 + BN_EPS) * g2 + be2
    return h @ w3 + b3


if __name__ == "__main__":
    key = jax.random.PRNGKey(0)
    k_params, k_ehr, k_cxr = jax.random.split(key, 3)
    params = init_params(k_params)

    fused_f32 = fold_params(params, weight_dtype=jnp.float32)   # accurate path
    fused_bf16 = fold_params(params)                             # default bf16 path

    # B=4: non-multiple-of-8 -> exercises batch padding, grid=(1,)
    # B=300: exercises the >=2-grid-step clamp (block_b=152, grid=(2,))
    for B in (4, 300):
        ehr_data = jax.random.normal(k_ehr, (B, EHR_DIM), jnp.float32)
        prev_cxr = jax.random.normal(k_cxr, (B, CXR_DIM), jnp.float32)
        ref = reference_forward(ehr_data, prev_cxr, params)

        # ---- f32 weights + f32 activations ----
        out = jax.jit(mlp_predictor)(ehr_data, prev_cxr, fused_f32)
        out = jax.block_until_ready(out)
        assert out.shape == (B, CXR_DIM)
        assert jnp.allclose(out, ref, atol=2e-3, rtol=2e-3), "f32 mismatch vs reference"

        # ---- bf16 weights + bf16 activations, f32 accumulation (default fast path) ----
        out_bf16 = jax.jit(mlp_predictor)(ehr_data, prev_cxr, fused_bf16)
        out_bf16 = jax.block_until_ready(out_bf16)
        assert jnp.allclose(out_bf16, ref, atol=6e-2, rtol=6e-2), "bf16 mismatch vs reference"

        # ---- fully bf16 path including the output stream ----
        out_bf16_io = jax.jit(
            functools.partial(mlp_predictor, out_dtype=jnp.bfloat16)
        )(ehr_data, prev_cxr, fused_bf16)
        out_bf16_io = jax.block_until_ready(out_bf16_io)
        assert out_bf16_io.dtype == jnp.bfloat16
        assert jnp.allclose(out_bf16_io.astype(jnp.float32), ref, atol=8e-2, rtol=8e-2), \
            "bf16-output mismatch vs reference"

    # TODO(synk): train-mode Dropout/BatchNorm (RNG + batch statistics) intentionally
    # not implemented; module semantics here are eval-mode, matching PyTorch .eval().

    print("KERNEL_OK")
</pallas_src>

<mosaic_0001>
module attributes {stable_mosaic.version = 11 : i64} {
  func.func @mlp_kernel(%arg0: i32, %arg1: memref<8x640xf32, #tpu.memory_space<vmem>>, %arg2: memref<640x256xf32, #tpu.memory_space<vmem>>, %arg3: memref<1x256xf32, #tpu.memory_space<vmem>>, %arg4: memref<256x512xf32, #tpu.memory_space<vmem>>, %arg5: memref<1x512xf32, #tpu.memory_space<vmem>>, %arg6: memref<512x512xf32, #tpu.memory_space<vmem>>, %arg7: memref<1x512xf32, #tpu.memory_space<vmem>>, %arg8: memref<8x512xf32, #tpu.memory_space<vmem>>) attributes {dimension_semantics = [#tpu.dimension_semantics<parallel>], iteration_bounds = array<i64: 1>, scalar_prefetch = 0 : i64, scratch_operands = 0 : i64, tpu.core_type = #tpu.core_type<tc>, window_params = [{transform_indices = @transform_0, window_bounds = array<i64: 8, 640>}, {pipeline_mode = #tpu.pipeline_mode<synchronous>, transform_indices = @transform_1, window_bounds = array<i64: 640, 256>}, {pipeline_mode = #tpu.pipeline_mode<synchronous>, transform_indices = @transform_2, window_bounds = array<i64: 1, 256>}, {pipeline_mode = #tpu.pipeline_mode<synchronous>, transform_indices = @transform_3, window_bounds = array<i64: 256, 512>}, {pipeline_mode = #tpu.pipeline_mode<synchronous>, transform_indices = @transform_4, window_bounds = array<i64: 1, 512>}, {pipeline_mode = #tpu.pipeline_mode<synchronous>, transform_indices = @transform_5, window_bounds = array<i64: 512, 512>}, {pipeline_mode = #tpu.pipeline_mode<synchronous>, transform_indices = @transform_6, window_bounds = array<i64: 1, 512>}, {transform_indices = @transform_7, window_bounds = array<i64: 8, 512>}]} {
    %c0 = arith.constant 0 : index
    %c0_0 = arith.constant 0 : index
    %0 = vector.load %arg1[%c0, %c0_0] : memref<8x640xf32, #tpu.memory_space<vmem>>, vector<8x640xf32>
    %c0_1 = arith.constant 0 : index
    %c0_2 = arith.constant 0 : index
    %1 = vector.load %arg2[%c0_1, %c0_2] : memref<640x256xf32, #tpu.memory_space<vmem>>, vector<640x256xf32>
    %cst = arith.constant dense<0.000000e+00> : vector<8x256xf32>
    %2 = tpu.matmul %0, %1, %cst {dimension_numbers = #tpu.dot_dimension_numbers<[1], [0], [0], [1], [0, 0, 1, 1], [], []>} : vector<8x640xf32>, vector<640x256xf32>, vector<8x256xf32> -> vector<8x256xf32>
    %c0_3 = arith.constant 0 : index
    %c0_4 = arith.constant 0 : index
    %3 = vector.load %arg3[%c0_3, %c0_4] : memref<1x256xf32, #tpu.memory_space<vmem>>, vector<1x256xf32>
    %4 = vector.broadcast %3 : vector<1x256xf32> to vector<8x256xf32>
    %5 = arith.addf %2, %4 : vector<8x256xf32>
    %cst_5 = arith.constant 0.000000e+00 : f32
    %6 = vector.broadcast %cst_5 : f32 to vector<8x256xf32>
    %7 = arith.maximumf %5, %6 : vector<8x256xf32>
    %c0_6 = arith.constant 0 : index
    %c0_7 = arith.constant 0 : index
    %8 = vector.load %arg4[%c0_6, %c0_7] : memref<256x512xf32, #tpu.memory_space<vmem>>, vector<256x512xf32>
    %cst_8 = arith.constant dense<0.000000e+00> : vector<8x512xf32>
    %9 = tpu.matmul %7, %8, %cst_8 {dimension_numbers = #tpu.dot_dimension_numbers<[1], [0], [0], [1], [0, 0, 1, 1], [], []>} : vector<8x256xf32>, vector<256x512xf32>, vector<8x512xf32> -> vector<8x512xf32>
    %c0_9 = arith.constant 0 : index
    %c0_10 = arith.constant 0 : index
    %10 = vector.load %arg5[%c0_9, %c0_10] : memref<1x512xf32, #tpu.memory_space<vmem>>, vector<1x512xf32>
    %11 = vector.broadcast %10 : vector<1x512xf32> to vector<8x512xf32>
    %12 = arith.addf %9, %11 : vector<8x512xf32>
    %cst_11 = arith.constant 0.000000e+00 : f32
    %13 = vector.broadcast %cst_11 : f32 to vector<8x512xf32>
    %14 = arith.maximumf %12, %13 : vector<8x512xf32>
    %c0_12 = arith.constant 0 : index
    %c0_13 = arith.constant 0 : index
    %15 = vector.load %arg6[%c0_12, %c0_13] : memref<512x512xf32, #tpu.memory_space<vmem>>, vector<512x512xf32>
    %cst_14 = arith.constant dense<0.000000e+00> : vector<8x512xf32>
    %16 = tpu.matmul %14, %15, %cst_14 {dimension_numbers = #tpu.dot_dimension_numbers<[1], [0], [0], [1], [0, 0, 1, 1], [], []>} : vector<8x512xf32>, vector<512x512xf32>, vector<8x512xf32> -> vector<8x512xf32>
    %c0_15 = arith.constant 0 : index
    %c0_16 = arith.constant 0 : index
    %17 = vector.load %arg7[%c0_15, %c0_16] : memref<1x512xf32, #tpu.memory_space<vmem>>, vector<1x512xf32>
    %18 = vector.broadcast %17 : vector<1x512xf32> to vector<8x512xf32>
    %19 = arith.addf %16, %18 : vector<8x512xf32>
    %c0_17 = arith.constant 0 : index
    %c0_18 = arith.constant 0 : index
    %20 = vector.load %arg8[%c0_17, %c0_18] : memref<8x512xf32, #tpu.memory_space<vmem>>, vector<8x512xf32>
    tpu.vector_store %arg8[%c0_17, %c0_18], %19 {strides = array<i32>} : memref<8x512xf32, #tpu.memory_space<vmem>>, vector<8x512xf32>,
    return
  }
  func.func @transform_0(%arg0: i32) -> (i32, i32) {
    %c0_i32 = arith.constant 0 : i32
    %c0_i32_0 = arith.constant 0 : i32
    return %arg0, %c0_i32 : i32, i32
  }
  func.func @transform_1(%arg0: i32) -> (i32, i32) {
    %c0_i32 = arith.constant 0 : i32
    %c0_i32_0 = arith.constant 0 : i32
    %c0_i32_1 = arith.constant 0 : i32
    return %c0_i32, %c0_i32_0 : i32, i32
  }
  func.func @transform_2(%arg0: i32) -> (i32, i32) {
    %c0_i32 = arith.constant 0 : i32
    %c0_i32_0 = arith.constant 0 : i32
    %c0_i32_1 = arith.constant 0 : i32
    return %c0_i32, %c0_i32_0 : i32, i32
  }
  func.func @transform_3(%arg0: i32) -> (i32, i32) {
    %c0_i32 = arith.constant 0 : i32
    %c0_i32_0 = arith.constant 0 : i32
    %c0_i32_1 = arith.constant 0 : i32
    return %c0_i32, %c0_i32_0 : i32, i32
  }
  func.func @transform_4(%arg0: i32) -> (i32, i32) {
    %c0_i32 = arith.constant 0 : i32
    %c0_i32_0 = arith.constant 0 : i32
    %c0_i32_1 = arith.constant 0 : i32
    return %c0_i32, %c0_i32_0 : i32, i32
  }
  func.func @transform_5(%arg0: i32) -> (i32, i32) {
    %c0_i32 = arith.constant 0 : i32
    %c0_i32_0 = arith.constant 0 : i32
    %c0_i32_1 = arith.constant 0 : i32
    return %c0_i32, %c0_i32_0 : i32, i32
  }
  func.func @transform_6(%arg0: i32) -> (i32, i32) {
    %c0_i32 = arith.constant 0 : i32
    %c0_i32_0 = arith.constant 0 : i32
    %c0_i32_1 = arith.constant 0 : i32
    return %c0_i32, %c0_i32_0 : i32, i32
  }
  func.func @transform_7(%arg0: i32) -> (i32, i32) {
    %c0_i32 = arith.constant 0 : i32
    %c0_i32_0 = arith.constant 0 : i32
    return %arg0, %c0_i32 : i32, i32
  }
}

</mosaic_0001>

<llo_original>
// kernel: mlp_predictor.1
$region0: #{mlp_predictor.1}
  #allocation0 [shape = 'u32[]', space=smem, size = 0x4, offset = 0x4, fixed_abs, tag = 'smem constant byte address 0x4 - core index']
  #allocation1 [shape = 'u32[72,128]{1,0:T(1,128)}', space=vmem, size = 0x9000, scoped, tag = 'internal scratch']
  %s0 = inlined_call_operand.vmem [shape: f32[8,640], index: 0, kind: input, shape index: {}]
  %s1 = inlined_call_operand.hbm [shape: f32[640,256], index: 1, kind: input, shape index: {}]
  %s2 = inlined_call_operand.vmem [shape: f32[1,256], index: 2, kind: input, shape index: {}]
  %s3 = inlined_call_operand.hbm [shape: f32[256,512], index: 3, kind: input, shape index: {}]
  %s4 = inlined_call_operand.vmem [shape: f32[1,512], index: 4, kind: input, shape index: {}]
  %s5 = inlined_call_operand.hbm [shape: f32[512,512], index: 5, kind: input, shape index: {}]
  %s6 = inlined_call_operand.vmem [shape: f32[1,512], index: 6, kind: input, shape index: {}]
  %s7 = inlined_call_operand.vmem [shape: f32[8,512], index: 7, kind: output, shape index: {}]
  %s8 = sld [smem:[#allocation0]]
  $region50: #{mlp_predictor.1} parent=0
    _
  %s10 = ssub.s32 1, %s8
  %s11 = scalar_select 0, %s10, %s8
  $region1: #{mlp_predictor.1} parent=0
    #allocation2 [shape = 'u8[655360]{0}', space=vmem, size = 0xa0000, scoped, tag = 'input window, operand 1, single buffered']
    #allocation3 [shape = 's32[1]{0}', space=sflag, size = 0x4, scoped, tag = 'scoped memory for mlp_predictor.1']
    #allocation4 [shape = 'u8[524288]{0}', space=vmem, size = 0x80000, scoped, tag = 'input window, operand 3, single buffered']
    #allocation5 [shape = 's32[1]{0}', space=sflag, size = 0x4, scoped, tag = 'scoped memory for mlp_predictor.1']
    #allocation6 [shape = 'u8[1048576]{0}', space=vmem, size = 0x100000, scoped, tag = 'input window, operand 5, single buffered']
    %12 = vsyncpa [#allocation3], 0
    %13 = vsyncpa [#allocation5], 0
    // Predicated region
    $region2: #{mlp_predictor.1} parent=1 // pred_check
      _
    $region3: #{mlp_predictor.1} parent=1 // pred_check_branch
      %15 = sbr.rel (0) target = $region5
    $region4: #{mlp_predictor.1} parent=1 // pred_region
      _
    $region5: #{mlp_predictor.1} parent=1 // pred_fallthru
      _
    // Predicated region
    $region6: #{mlp_predictor.1} parent=1 // pred_check
      _
    $region7: #{mlp_predictor.1} parent=1 // pred_check_branch
      %17 = sbr.rel (0) target = $region9
    $region8: #{mlp_predictor.1} parent=1 // pred_region
      %19 = vsyncadd [#allocation3], 0
      %s20 = sshll.u32 %s1, 4
      %s21 = int_to_ptr.hbm [resolvable:$true] %s20
      %s22 = sshll.u32 [#allocation2], 4
      %s23 = int_to_ptr.vmem [resolvable:$true] %s22
      %28 = dma.hbm_to_vmem [thread:$0]  %s21, 20480, %s23, [#allocation3], 256, 256, 16
    $region9: #{mlp_predictor.1} parent=1 // pred_fallthru
      _
    // Predicated region
    $region10: #{mlp_predictor.1} parent=1 // pred_check
      _
    $region11: #{mlp_predictor.1} parent=1 // pred_check_branch
      %30 = sbr.rel (0) target = $region13
    $region12: #{mlp_predictor.1} parent=1 // pred_region
      _
    $region13: #{mlp_predictor.1} parent=1 // pred_fallthru
      _
    // Predicated region
    $region14: #{mlp_predictor.1} parent=1 // pred_check
      _
    $region15: #{mlp_predictor.1} parent=1 // pred_check_branch
      %32 = sbr.rel (0) target = $region17
    $region16: #{mlp_predictor.1} parent=1 // pred_region
      %34 = vsyncadd [#allocation5], 0
      %s35 = sshll.u32 %s3, 4
      %s36 = int_to_ptr.hbm [resolvable:$true] %s35
      %s37 = sshll.u32 [#allocation4], 4
      %s38 = int_to_ptr.vmem [resolvable:$true] %s37
      %43 = dma.hbm_to_vmem [thread:$0]  %s36, 16384, %s38, [#allocation5], 512, 512, 32
    $region17: #{mlp_predictor.1} parent=1 // pred_fallthru
      _
    // Predicated region
    $region18: #{mlp_predictor.1} parent=1 // pred_check
      _
    $region19: #{mlp_predictor.1} parent=1 // pred_check_branch
      %45 = sbr.rel (0) target = $region21
    $region20: #{mlp_predictor.1} parent=1 // pred_region
      _
    $region21: #{mlp_predictor.1} parent=1 // pred_fallthru
      _
    // Predicated region
    $region22: #{mlp_predictor.1} parent=1 // pred_check
      _
    $region23: #{mlp_predictor.1} parent=1 // pred_check_branch
      %47 = sbr.rel (0) target = $region25
    $region24: #{mlp_predictor.1} parent=1 // pred_region
      %49 = vsyncadd [#allocation5], 0
      %s50 = sshll.u32 %s5, 4
      %s51 = int_to_ptr.hbm [resolvable:$true] %s50
      %s52 = sshll.u32 [#allocation6], 4
      %s53 = int_to_ptr.vmem [resolvable:$true] %s52
      %58 = dma.hbm_to_vmem [thread:$0]  %s51, 32768, %s53, [#allocation5], 512, 512, 32
    $region25: #{mlp_predictor.1} parent=1 // pred_fallthru
      _
    // Predicated region
    $region26: #{mlp_predictor.1} parent=1 // pred_check
      _
    $region27: #{mlp_predictor.1} parent=1 // pred_check_branch
      %60 = sbr.rel (0) target = $region29
    $region28: #{mlp_predictor.1} parent=1 // pred_region
      _
    $region29: #{mlp_predictor.1} parent=1 // pred_fallthru
      _
    // Predicated region
    $region30: #{mlp_predictor.1} parent=1 // pred_check
      _
    $region31: #{mlp_predictor.1} parent=1 // pred_check_branch
      %62 = sbr.rel (0) target = $region33
    $region32: #{mlp_predictor.1} parent=1 // pred_region
      %64 = dma.done [#allocation3], 20480
    $region33: #{mlp_predictor.1} parent=1 // pred_fallthru
      _
    // Predicated region
    $region34: #{mlp_predictor.1} parent=1 // pred_check
      _
    $region35: #{mlp_predictor.1} parent=1 // pred_check_branch
      %66 = sbr.rel (0) target = $region37
    $region36: #{mlp_predictor.1} parent=1 // pred_region
      %68 = dma.done [#allocation5], 16384
    $region37: #{mlp_predictor.1} parent=1 // pred_fallthru
      _
    // Predicated region
    $region38: #{mlp_predictor.1} parent=1 // pred_check
      _
    $region39: #{mlp_predictor.1} parent=1 // pred_check_branch
      %70 = sbr.rel (0) target = $region41
    $region40: #{mlp_predictor.1} parent=1 // pred_region
      %72 = dma.done [#allocation5], 32768
    $region41: #{mlp_predictor.1} parent=1 // pred_fallthru
      _
    %v73 = vld [vmem:[%s0] sm:$0xff]
    %v74 = vld [vmem:[%s0 + $0x8] sm:$0xff]
    %v75 = vld [vmem:[%s0 + $0x10] sm:$0xff]
    %v76 = vld [vmem:[%s0 + $0x18] sm:$0xff]
    %v77 = vld [vmem:[%s0 + $0x20] sm:$0xff]
    %v78 = vld [vmem:[#allocation2] sm:$0xff]
    %v79 = vld [vmem:[#allocation2 + $0x8] sm:$0xff]
    %v80 = vld [vmem:[#allocation2 + $0x10] sm:$0xff]
    %v81 = vld [vmem:[#allocation2 + $0x18] sm:$0xff]
    %v82 = vld [vmem:[#allocation2 + $0x20] sm:$0xff]
    %v83 = vld [vmem:[#allocation2 + $0x28] sm:$0xff]
    %v84 = vld [vmem:[#allocation2 + $0x30] sm:$0xff]
    %v85 = vld [vmem:[#allocation2 + $0x38] sm:$0xff]
    %v86 = vld [vmem:[#allocation2 + $0x40] sm:$0xff]
    %v87 = vld [vmem:[#allocation2 + $0x48] sm:$0xff]
    %v88 = vld [vmem:[#allocation2 + $0x50] sm:$0xff]
    %v89 = vld [vmem:[#allocation2 + $0x58] sm:$0xff]
    %v90 = vld [vmem:[#allocation2 + $0x60] sm:$0xff]
    %v91 = vld [vmem:[#allocation2 + $0x68] sm:$0xff]
    %v92 = vld [vmem:[#allocation2 + $0x70] sm:$0xff]
    %v93 = vld [vmem:[#allocation2 + $0x78] sm:$0xff]
    %v94 = vld [vmem:[#allocation2 + $0x80] sm:$0xff]
    %v95 = vld [vmem:[#allocation2 + $0x88] sm:$0xff]
    %v96 = vld [vmem:[#allocation2 + $0x90] sm:$0xff]
    %v97 = vld [vmem:[#allocation2 + $0x98] sm:$0xff]
    %v98 = vld [vmem:[#allocation2 + $0xa0] sm:$0xff]
    %v99 = vld [vmem:[#allocation2 + $0xa8] sm:$0xff]
    %v100 = vld [vmem:[#allocation2 + $0xb0] sm:$0xff]
    %v101 = vld [vmem:[#allocation2 + $0xb8] sm:$0xff]
    %v102 = vld [vmem:[#allocation2 + $0xc0] sm:$0xff]
    %v103 = vld [vmem:[#allocation2 + $0xc8] sm:$0xff]
    %v104 = vld [vmem:[#allocation2 + $0xd0] sm:$0xff]
    %v105 = vld [vmem:[#allocation2 + $0xd8] sm:$0xff]
    %v106 = vld [vmem:[#allocation2 + $0xe0] sm:$0xff]
    %v107 = vld [vmem:[#allocation2 + $0xe8] sm:$0xff]
    %v108 = vld [vmem:[#allocation2 + $0xf0] sm:$0xff]
    %v109 = vld [vmem:[#allocation2 + $0xf8] sm:$0xff]
    %v110 = vld [vmem:[#allocation2 + $0x100] sm:$0xff]
    %v111 = vld [vmem:[#allocation2 + $0x108] sm:$0xff]
    %v112 = vld [vmem:[#allocation2 + $0x110] sm:$0xff]
    %v113 = vld [vmem:[#allocation2 + $0x118] sm:$0xff]
    %v114 = vld [vmem:[#allocation2 + $0x120] sm:$0xff]
    %v115 = vld [vmem:[#allocation2 + $0x128] sm:$0xff]
    %v116 = vld [vmem:[#allocation2 + $0x130] sm:$0xff]
    %v117 = vld [vmem:[#allocation2 + $0x138] sm:$0xff]
    %v118 = vld [vmem:[#allocation2 + $0x140] sm:$0xff]
    %v119 = vld [vmem:[#allocation2 + $0x148] sm:$0xff]
    %v120 = vld [vmem:[#allocation2 + $0x150] sm:$0xff]
    %v121 = vld [vmem:[#allocation2 + $0x158] sm:$0xff]
    %v122 = vld [vmem:[#allocation2 + $0x160] sm:$0xff]
    %v123 = vld [vmem:[#allocation2 + $0x168] sm:$0xff]
    %v124 = vld [vmem:[#allocation2 + $0x170] sm:$0xff]
    %v125 = vld [vmem:[#allocation2 + $0x178] sm:$0xff]
    %v126 = vld [vmem:[#allocation2 + $0x180] sm:$0xff]
    %v127 = vld [vmem:[#allocation2 + $0x188] sm:$0xff]
    %v128 = vld [vmem:[#allocation2 + $0x190] sm:$0xff]
    %v129 = vld [vmem:[#allocation2 + $0x198] sm:$0xff]
    %v130 = vld [vmem:[#allocation2 + $0x1a0] sm:$0xff]
    %v131 = vld [vmem:[#allocation2 + $0x1a8] sm:$0xff]
    %v132 = vld [vmem:[#allocation2 + $0x1b0] sm:$0xff]
    %v133 = vld [vmem:[#allocation2 + $0x1b8] sm:$0xff]
    %v134 = vld [vmem:[#allocation2 + $0x1c0] sm:$0xff]
    %v135 = vld [vmem:[#allocation2 + $0x1c8] sm:$0xff]
    %v136 = vld [vmem:[#allocation2 + $0x1d0] sm:$0xff]
    %v137 = vld [vmem:[#allocation2 + $0x1d8] sm:$0xff]
    %v138 = vld [vmem:[#allocation2 + $0x1e0] sm:$0xff]
    %v139 = vld [vmem:[#allocation2 + $0x1e8] sm:$0xff]
    %v140 = vld [vmem:[#allocation2 + $0x1f0] sm:$0xff]
    %v141 = vld [vmem:[#allocation2 + $0x1f8] sm:$0xff]
    %v142 = vld [vmem:[#allocation2 + $0x200] sm:$0xff]
    %v143 = vld [vmem:[#allocation2 + $0x208] sm:$0xff]
    %v144 = vld [vmem:[#allocation2 + $0x210] sm:$0xff]
    %v145 = vld [vmem:[#allocation2 + $0x218] sm:$0xff]
    %v146 = vld [vmem:[#allocation2 + $0x220] sm:$0xff]
    %v147 = vld [vmem:[#allocation2 + $0x228] sm:$0xff]
    %v148 = vld [vmem:[#allocation2 + $0x230] sm:$0xff]
    %v149 = vld [vmem:[#allocation2 + $0x238] sm:$0xff]
    %v150 = vld [vmem:[#allocation2 + $0x240] sm:$0xff]
    %v151 = vld [vmem:[#allocation2 + $0x248] sm:$0xff]
    %v152 = vld [vmem:[#allocation2 + $0x250] sm:$0xff]
    %v153 = vld [vmem:[#allocation2 + $0x258] sm:$0xff]
    %v154 = vld [vmem:[#allocation2 + $0x260] sm:$0xff]
    %v155 = vld [vmem:[#allocation2 + $0x268] sm:$0xff]
    %v156 = vld [vmem:[#allocation2 + $0x270] sm:$0xff]
    %v157 = vld [vmem:[#allocation2 + $0x278] sm:$0xff]
    %v158 = vld [vmem:[#allocation2 + $0x280] sm:$0xff]
    %v159 = vld [vmem:[#allocation2 + $0x288] sm:$0xff]
    %v160 = vld [vmem:[#allocation2 + $0x290] sm:$0xff]
    %v161 = vld [vmem:[#allocation2 + $0x298] sm:$0xff]
    %v162 = vld [vmem:[#allocation2 + $0x2a0] sm:$0xff]
    %v163 = vld [vmem:[#allocation2 + $0x2a8] sm:$0xff]
    %v164 = vld [vmem:[#allocation2 + $0x2b0] sm:$0xff]
    %v165 = vld [vmem:[#allocation2 + $0x2b8] sm:$0xff]
    %v166 = vld [vmem:[#allocation2 + $0x2c0] sm:$0xff]
    %v167 = vld [vmem:[#allocation2 + $0x2c8] sm:$0xff]
    %v168 = vld [vmem:[#allocation2 + $0x2d0] sm:$0xff]
    %v169 = vld [vmem:[#allocation2 + $0x2d8] sm:$0xff]
    %v170 = vld [vmem:[#allocation2 + $0x2e0] sm:$0xff]
    %v171 = vld [vmem:[#allocation2 + $0x2e8] sm:$0xff]
    %v172 = vld [vmem:[#allocation2 + $0x2f0] sm:$0xff]
    %v173 = vld [vmem:[#allocation2 + $0x2f8] sm:$0xff]
    %v174 = vld [vmem:[#allocation2 + $0x300] sm:$0xff]
    %v175 = vld [vmem:[#allocation2 + $0x308] sm:$0xff]
    %v176 = vld [vmem:[#allocation2 + $0x310] sm:$0xff]
    %v177 = vld [vmem:[#allocation2 + $0x318] sm:$0xff]
    %v178 = vld [vmem:[#allocation2 + $0x320] sm:$0xff]
    %v179 = vld [vmem:[#allocation2 + $0x328] sm:$0xff]
    %v180 = vld [vmem:[#allocation2 + $0x330] sm:$0xff]
    %v181 = vld [vmem:[#allocation2 + $0x338] sm:$0xff]
    %v182 = vld [vmem:[#allocation2 + $0x340] sm:$0xff]
    %v183 = vld [vmem:[#allocation2 + $0x348] sm:$0xff]
    %v184 = vld [vmem:[#allocation2 + $0x350] sm:$0xff]
    %v185 = vld [vmem:[#allocation2 + $0x358] sm:$0xff]
    %v186 = vld [vmem:[#allocation2 + $0x360] sm:$0xff]
    %v187 = vld [vmem:[#allocation2 + $0x368] sm:$0xff]
    %v188 = vld [vmem:[#allocation2 + $0x370] sm:$0xff]
    %v189 = vld [vmem:[#allocation2 + $0x378] sm:$0xff]
    %v190 = vld [vmem:[#allocation2 + $0x380] sm:$0xff]
    %v191 = vld [vmem:[#allocation2 + $0x388] sm:$0xff]
    %v192 = vld [vmem:[#allocation2 + $0x390] sm:$0xff]
    %v193 = vld [vmem:[#allocation2 + $0x398] sm:$0xff]
    %v194 = vld [vmem:[#allocation2 + $0x3a0] sm:$0xff]
    %v195 = vld [vmem:[#allocation2 + $0x3a8] sm:$0xff]
    %v196 = vld [vmem:[#allocation2 + $0x3b0] sm:$0xff]
    %v197 = vld [vmem:[#allocation2 + $0x3b8] sm:$0xff]
    %v198 = vld [vmem:[#allocation2 + $0x3c0] sm:$0xff]
    %v199 = vld [vmem:[#allocation2 + $0x3c8] sm:$0xff]
    %v200 = vld [vmem:[#allocation2 + $0x3d0] sm:$0xff]
    %v201 = vld [vmem:[#allocation2 + $0x3d8] sm:$0xff]
    %v202 = vld [vmem:[#allocation2 + $0x3e0] sm:$0xff]
    %v203 = vld [vmem:[#allocation2 + $0x3e8] sm:$0xff]
    %v204 = vld [vmem:[#allocation2 + $0x3f0] sm:$0xff]
    %v205 = vld [vmem:[#allocation2 + $0x3f8] sm:$0xff]
    %v206 = vld [vmem:[#allocation2 + $0x400] sm:$0xff]
    %v207 = vld [vmem:[#allocation2 + $0x408] sm:$0xff]
    %v208 = vld [vmem:[#allocation2 + $0x410] sm:$0xff]
    %v209 = vld [vmem:[#allocation2 + $0x418] sm:$0xff]
    %v210 = vld [vmem:[#allocation2 + $0x420] sm:$0xff]
    %v211 = vld [vmem:[#allocation2 + $0x428] sm:$0xff]
    %v212 = vld [vmem:[#allocation2 + $0x430] sm:$0xff]
    %v213 = vld [vmem:[#allocation2 + $0x438] sm:$0xff]
    %v214 = vld [vmem:[#allocation2 + $0x440] sm:$0xff]
    %v215 = vld [vmem:[#allocation2 + $0x448] sm:$0xff]
    %v216 = vld [vmem:[#allocation2 + $0x450] sm:$0xff]
    %v217 = vld [vmem:[#allocation2 + $0x458] sm:$0xff]
    %v218 = vld [vmem:[#allocation2 + $0x460] sm:$0xff]
    %v219 = vld [vmem:[#allocation2 + $0x468] sm:$0xff]
    %v220 = vld [vmem:[#allocation2 + $0x470] sm:$0xff]
    %v221 = vld [vmem:[#allocation2 + $0x478] sm:$0xff]
    %v222 = vld [vmem:[#allocation2 + $0x480] sm:$0xff]
    %v223 = vld [vmem:[#allocation2 + $0x488] sm:$0xff]
    %v224 = vld [vmem:[#allocation2 + $0x490] sm:$0xff]
    %v225 = vld [vmem:[#allocation2 + $0x498] sm:$0xff]
    %v226 = vld [vmem:[#allocation2 + $0x4a0] sm:$0xff]
    %v227 = vld [vmem:[#allocation2 + $0x4a8] sm:$0xff]
    %v228 = vld [vmem:[#allocation2 + $0x4b0] sm:$0xff]
    %v229 = vld [vmem:[#allocation2 + $0x4b8] sm:$0xff]
    %v230 = vld [vmem:[#allocation2 + $0x4c0] sm:$0xff]
    %v231 = vld [vmem:[#allocation2 + $0x4c8] sm:$0xff]
    %v232 = vld [vmem:[#allocation2 + $0x4d0] sm:$0xff]
    %v233 = vld [vmem:[#allocation2 + $0x4d8] sm:$0xff]
    %v234 = vld [vmem:[#allocation2 + $0x4e0] sm:$0xff]
    %v235 = vld [vmem:[#allocation2 + $0x4e8] sm:$0xff]
    %v236 = vld [vmem:[#allocation2 + $0x4f0] sm:$0xff]
    %v237 = vld [vmem:[#allocation2 + $0x4f8] sm:$0xff]
    %v238 = vld [vmem:[%s2] sm:$0x3]
    %v240 = vperm.slane %v238, 0
    %v241 = vperm.slane %v238, 1
    %244 = vmatpush.msra.mxu0 %v108
    %245 = vmatpush.msra.mxu0 %v106
    %246 = vmatpush.msra.mxu0 %v104
    %247 = vmatpush.msra.mxu0 %v102
    %248 = vmatpush.msra.mxu0 %v100
    %249 = vmatpush.msra.mxu0 %v98
    %250 = vmatpush.msra.mxu0 %v96
    %251 = vmatpush.msra.mxu0 %v94
    %252 = vmatpush.msra.mxu0 %v92
    %253 = vmatpush.msra.mxu0 %v90
    %254 = vmatpush.msra.mxu0 %v88
    %255 = vmatpush.msra.mxu0 %v86
    %256 = vmatpush.msra.mxu0 %v84
    %257 = vmatpush.msra.mxu0 %v82
    %258 = vmatpush.msra.mxu0 %v80
    %259 = vmatpush.msra.mxu0 %v78
    %260 = vmatmul.f32.gmra.mxu0 %v73
    %v261 = vpop.f32.mrf.mxu0
    %v262 = vadd.f32 %v240, %v261
    %263 = vdwg.mxu0
    %264 = vmatpush.msra.mxu0 %v140
    %265 = vmatpush.msra.mxu0 %v138
    %266 = vmatpush.msra.mxu0 %v136
    %267 = vmatpush.msra.mxu0 %v134
    %268 = vmatpush.msra.mxu0 %v132
    %269 = vmatpush.msra.mxu0 %v130
    %270 = vmatpush.msra.mxu0 %v128
    %271 = vmatpush.msra.mxu0 %v126
    %272 = vmatpush.msra.mxu0 %v124
    %273 = vmatpush.msra.mxu0 %v122
    %274 = vmatpush.msra.mxu0 %v120
    %275 = vmatpush.msra.mxu0 %v118
    %276 = vmatpush.msra.mxu0 %v116
    %277 = vmatpush.msra.mxu0 %v114
    %278 = vmatpush.msra.mxu0 %v112
    %279 = vmatpush.msra.mxu0 %v110
    %280 = vmatmul.f32.gmra.mxu0 %v74
    %v281 = vpop.f32.mrf.mxu0
    %v282 = vadd.f32 %v262, %v281
    %283 = vdwg.mxu0
    %284 = vmatpush.msra.mxu0 %v172
    %285 = vmatpush.msra.mxu0 %v170
    %286 = vmatpush.msra.mxu0 %v168
    %287 = vmatpush.msra.mxu0 %v166
    %288 = vmatpush.msra.mxu0 %v164
    %289 = vmatpush.msra.mxu0 %v162
    %290 = vmatpush.msra.mxu0 %v160
    %291 = vmatpush.msra.mxu0 %v158
    %292 = vmatpush.msra.mxu0 %v156
    %293 = vmatpush.msra.mxu0 %v154
    %294 = vmatpush.msra.mxu0 %v152
    %295 = vmatpush.msra.mxu0 %v150
    %296 = vmatpush.msra.mxu0 %v148
    %297 = vmatpush.msra.mxu0 %v146
    %298 = vmatpush.msra.mxu0 %v144
    %299 = vmatpush.msra.mxu0 %v142
    %300 = vmatmul.f32.gmra.mxu0 %v75
    %v301 = vpop.f32.mrf.mxu0
    %v302 = vadd.f32 %v282, %v301
    %303 = vdwg.mxu0
    %304 = vmatpush.msra.mxu0 %v204
    %305 = vmatpush.msra.mxu0 %v202
    %306 = vmatpush.msra.mxu0 %v200
    %307 = vmatpush.msra.mxu0 %v198
    %308 = vmatpush.msra.mxu0 %v196
    %309 = vmatpush.msra.mxu0 %v194
    %310 = vmatpush.msra.mxu0 %v192
    %311 = vmatpush.msra.mxu0 %v190
    %312 = vmatpush.msra.mxu0 %v188
    %313 = vmatpush.msra.mxu0 %v186
    %314 = vmatpush.msra.mxu0 %v184
    %315 = vmatpush.msra.mxu0 %v182
    %316 = vmatpush.msra.mxu0 %v180
    %317 = vmatpush.msra.mxu0 %v178
    %318 = vmatpush.msra.mxu0 %v176
    %319 = vmatpush.msra.mxu0 %v174
    %320 = vmatmul.f32.gmra.mxu0 %v76
    %v321 = vpop.f32.mrf.mxu0
    %v322 = vadd.f32 %v302, %v321
    %323 = vdwg.mxu0
    %324 = vmatpush.msra.mxu0 %v236
    %325 = vmatpush.msra.mxu0 %v234
    %326 = vmatpush.msra.mxu0 %v232
    %327 = vmatpush.msra.mxu0 %v230
    %328 = vmatpush.msra.mxu0 %v228
    %329 = vmatpush.msra.mxu0 %v226
    %330 = vmatpush.msra.mxu0 %v224
    %331 = vmatpush.msra.mxu0 %v222
    %332 = vmatpush.msra.mxu0 %v220
    %333 = vmatpush.msra.mxu0 %v218
    %334 = vmatpush.msra.mxu0 %v216
    %335 = vmatpush.msra.mxu0 %v214
    %336 = vmatpush.msra.mxu0 %v212
    %337 = vmatpush.msra.mxu0 %v210
    %338 = vmatpush.msra.mxu0 %v208
    %339 = vmatpush.msra.mxu0 %v206
    %340 = vmatmul.f32.gmra.mxu0 %v77
    %v341 = vpop.f32.mrf.mxu0
    %v342 = vadd.f32 %v322, %v341
    %343 = vdwg.mxu0
    %344 = vmatpush.msra.mxu0 %v109
    %345 = vmatpush.msra.mxu0 %v107
    %346 = vmatpush.msra.mxu0 %v105
    %347 = vmatpush.msra.mxu0 %v103
    %348 = vmatpush.msra.mxu0 %v101
    %349 = vmatpush.msra.mxu0 %v99
    %350 = vmatpush.msra.mxu0 %v97
    %351 = vmatpush.msra.mxu0 %v95
    %352 = vmatpush.msra.mxu0 %v93
    %353 = vmatpush.msra.mxu0 %v91
    %354 = vmatpush.msra.mxu0 %v89
    %355 = vmatpush.msra.mxu0 %v87
    %356 = vmatpush.msra.mxu0 %v85
    %357 = vmatpush.msra.mxu0 %v83
    %358 = vmatpush.msra.mxu0 %v81
    %359 = vmatpush.msra.mxu0 %v79
    %360 = vmatmul.f32.gmra.mxu0 %v73
    %v361 = vpop.f32.mrf.mxu0
    %v362 = vadd.f32 %v241, %v361
    %363 = vdwg.mxu0
    %364 = vmatpush.msra.mxu0 %v141
    %365 = vmatpush.msra.mxu0 %v139
    %366 = vmatpush.msra.mxu0 %v137
    %367 = vmatpush.msra.mxu0 %v135
    %368 = vmatpush.msra.mxu0 %v133
    %369 = vmatpush.msra.mxu0 %v131
    %370 = vmatpush.msra.mxu0 %v129
    %371 = vmatpush.msra.mxu0 %v127
    %372 = vmatpush.msra.mxu0 %v125
    %373 = vmatpush.msra.mxu0 %v123
    %374 = vmatpush.msra.mxu0 %v121
    %375 = vmatpush.msra.mxu0 %v119
    %376 = vmatpush.msra.mxu0 %v117
    %377 = vmatpush.msra.mxu0 %v115
    %378 = vmatpush.msra.mxu0 %v113
    %379 = vmatpush.msra.mxu0 %v111
    %380 = vmatmul.f32.gmra.mxu0 %v74
    %v381 = vpop.f32.mrf.mxu0
    %v382 = vadd.f32 %v362, %v381
    %383 = vdwg.mxu0
    %384 = vmatpush.msra.mxu0 %v173
    %385 = vmatpush.msra.mxu0 %v171
    %386 = vmatpush.msra.mxu0 %v169
    %387 = vmatpush.msra.mxu0 %v167
    %388 = vmatpush.msra.mxu0 %v165
    %389 = vmatpush.msra.mxu0 %v163
    %390 = vmatpush.msra.mxu0 %v161
    %391 = vmatpush.msra.mxu0 %v159
    %392 = vmatpush.msra.mxu0 %v157
    %393 = vmatpush.msra.mxu0 %v155
    %394 = vmatpush.msra.mxu0 %v153
    %395 = vmatpush.msra.mxu0 %v151
    %396 = vmatpush.msra.mxu0 %v149
    %397 = vmatpush.msra.mxu0 %v147
    %398 = vmatpush.msra.mxu0 %v145
    %399 = vmatpush.msra.mxu0 %v143
    %400 = vmatmul.f32.gmra.mxu0 %v75
    %v401 = vpop.f32.mrf.mxu0
    %v402 = vadd.f32 %v382, %v401
    %403 = vdwg.mxu0
    %404 = vmatpush.msra.mxu0 %v205
    %405 = vmatpush.msra.mxu0 %v203
    %406 = vmatpush.msra.mxu0 %v201
    %407 = vmatpush.msra.mxu0 %v199
    %408 = vmatpush.msra.mxu0 %v197
    %409 = vmatpush.msra.mxu0 %v195
    %410 = vmatpush.msra.mxu0 %v193
    %411 = vmatpush.msra.mxu0 %v191
    %412 = vmatpush.msra.mxu0 %v189
    %413 = vmatpush.msra.mxu0 %v187
    %414 = vmatpush.msra.mxu0 %v185
    %415 = vmatpush.msra.mxu0 %v183
    %416 = vmatpush.msra.mxu0 %v181
    %417 = vmatpush.msra.mxu0 %v179
    %418 = vmatpush.msra.mxu0 %v177
    %419 = vmatpush.msra.mxu0 %v175
    %420 = vmatmul.f32.gmra.mxu0 %v76
    %v421 = vpop.f32.mrf.mxu0
    %v422 = vadd.f32 %v402, %v421
    %423 = vdwg.mxu0
    %424 = vmatpush.msra.mxu0 %v237
    %425 = vmatpush.msra.mxu0 %v235
    %426 = vmatpush.msra.mxu0 %v233
    %427 = vmatpush.msra.mxu0 %v231
    %428 = vmatpush.msra.mxu0 %v229
    %429 = vmatpush.msra.mxu0 %v227
    %430 = vmatpush.msra.mxu0 %v225
    %431 = vmatpush.msra.mxu0 %v223
    %432 = vmatpush.msra.mxu0 %v221
    %433 = vmatpush.msra.mxu0 %v219
    %434 = vmatpush.msra.mxu0 %v217
    %435 = vmatpush.msra.mxu0 %v215
    %436 = vmatpush.msra.mxu0 %v213
    %437 = vmatpush.msra.mxu0 %v211
    %438 = vmatpush.msra.mxu0 %v209
    %439 = vmatpush.msra.mxu0 %v207
    %440 = vmatmul.f32.gmra.mxu0 %v77
    %v441 = vpop.f32.mrf.mxu0
    %v442 = vadd.f32 %v422, %v441
    %443 = vdwg.mxu0
    %v444 = vmax.f32 %v342, 0.0
    %v445 = vmax.f32 %v442, 0.0
    %v446 = vld [vmem:[#allocation4] sm:$0xff]
    %v447 = vld [vmem:[#allocation4 + $0x8] sm:$0xff]
    %v448 = vld [vmem:[#allocation4 + $0x10] sm:$0xff]
    %v449 = vld [vmem:[#allocation4 + $0x18] sm:$0xff]
    %v450 = vld [vmem:[#allocation4 + $0x20] sm:$0xff]
    %v451 = vld [vmem:[#allocation4 + $0x28] sm:$0xff]
    %v452 = vld [vmem:[#allocation4 + $0x30] sm:$0xff]
    %v453 = vld [vmem:[#allocation4 + $0x38] sm:$0xff]
    %v454 = vld [vmem:[#allocation4 + $0x40] sm:$0xff]
    %v455 = vld [vmem:[#allocation4 + $0x48] sm:$0xff]
    %v456 = vld [vmem:[#allocation4 + $0x50] sm:$0xff]
    %v457 = vld [vmem:[#allocation4 + $0x58] sm:$0xff]
    %v458 = vld [vmem:[#allocation4 + $0x60] sm:$0xff]
    %v459 = vld [vmem:[#allocation4 + $0x68] sm:$0xff]
    %v460 = vld [vmem:[#allocation4 + $0x70] sm:$0xff]
    %v461 = vld [vmem:[#allocation4 + $0x78] sm:$0xff]
    %v462 = vld [vmem:[#allocation4 + $0x80] sm:$0xff]
    %v463 = vld [vmem:[#allocation4 + $0x88] sm:$0xff]
    %v464 = vld [vmem:[#allocation4 + $0x90] sm:$0xff]
    %v465 = vld [vmem:[#allocation4 + $0x98] sm:$0xff]
    %v466 = vld [vmem:[#allocation4 + $0xa0] sm:$0xff]
    %v467 = vld [vmem:[#allocation4 + $0xa8] sm:$0xff]
    %v468 = vld [vmem:[#allocation4 + $0xb0] sm:$0xff]
    %v469 = vld [vmem:[#allocation4 + $0xb8] sm:$0xff]
    %v470 = vld [vmem:[#allocation4 + $0xc0] sm:$0xff]
    %v471 = vld [vmem:[#allocation4 + $0xc8] sm:$0xff]
    %v472 = vld [vmem:[#allocation4 + $0xd0] sm:$0xff]
    %v473 = vld [vmem:[#allocation4 + $0xd8] sm:$0xff]
    %v474 = vld [vmem:[#allocation4 + $0xe0] sm:$0xff]
    %v475 = vld [vmem:[#allocation4 + $0xe8] sm:$0xff]
    %v476 = vld [vmem:[#allocation4 + $0xf0] sm:$0xff]
    %v477 = vld [vmem:[#allocation4 + $0xf8] sm:$0xff]
    %v478 = vld [vmem:[#allocation4 + $0x100] sm:$0xff]
    %v479 = vld [vmem:[#allocation4 + $0x108] sm:$0xff]
    %v480 = vld [vmem:[#allocation4 + $0x110] sm:$0xff]
    %v481 = vld [vmem:[#allocation4 + $0x118] sm:$0xff]
    %v482 = vld [vmem:[#allocation4 + $0x120] sm:$0xff]
    %v483 = vld [vmem:[#allocation4 + $0x128] sm:$0xff]
    %v484 = vld [vmem:[#allocation4 + $0x130] sm:$0xff]
    %v485 = vld [vmem:[#allocation4 + $0x138] sm:$0xff]
    %v486 = vld [vmem:[#allocation4 + $0x140] sm:$0xff]
    %v487 = vld [vmem:[#allocation4 + $0x148] sm:$0xff]
    %v488 = vld [vmem:[#allocation4 + $0x150] sm:$0xff]
    %v489 = vld [vmem:[#allocation4 + $0x158] sm:$0xff]
    %v490 = vld [vmem:[#allocation4 + $0x160] sm:$0xff]
    %v491 = vld [vmem:[#allocation4 + $0x168] sm:$0xff]
    %v492 = vld [vmem:[#allocation4 + $0x170] sm:$0xff]
    %v493 = vld [vmem:[#allocation4 + $0x178] sm:$0xff]
    %v494 = vld [vmem:[#allocation4 + $0x180] sm:$0xff]
    %v495 = vld [vmem:[#allocation4 + $0x188] sm:$0xff]
    %v496 = vld [vmem:[#allocation4 + $0x190] sm:$0xff]
    %v497 = vld [vmem:[#allocation4 + $0x198] sm:$0xff]
    %v498 = vld [vmem:[#allocation4 + $0x1a0] sm:$0xff]
    %v499 = vld [vmem:[#allocation4 + $0x1a8] sm:$0xff]
    %v500 = vld [vmem:[#allocation4 + $0x1b0] sm:$0xff]
    %v501 = vld [vmem:[#allocation4 + $0x1b8] sm:$0xff]
    %v502 = vld [vmem:[#allocation4 + $0x1c0] sm:$0xff]
    %v503 = vld [vmem:[#allocation4 + $0x1c8] sm:$0xff]
    %v504 = vld [vmem:[#allocation4 + $0x1d0] sm:$0xff]
    %v505 = vld [vmem:[#allocation4 + $0x1d8] sm:$0xff]
    %v506 = vld [vmem:[#allocation4 + $0x1e0] sm:$0xff]
    %v507 = vld [vmem:[#allocation4 + $0x1e8] sm:$0xff]
    %v508 = vld [vmem:[#allocation4 + $0x1f0] sm:$0xff]
    %v509 = vld [vmem:[#allocation4 + $0x1f8] sm:$0xff]
    %v510 = vld [vmem:[#allocation4 + $0x200] sm:$0xff]
    %v511 = vld [vmem:[#allocation4 + $0x208] sm:$0xff]
    %v512 = vld [vmem:[#allocation4 + $0x210] sm:$0xff]
    %v513 = vld [vmem:[#allocation4 + $0x218] sm:$0xff]
    %v514 = vld [vmem:[#allocation4 + $0x220] sm:$0xff]
    %v515 = vld [vmem:[#allocation4 + $0x228] sm:$0xff]
    %v516 = vld [vmem:[#allocation4 + $0x230] sm:$0xff]
    %v517 = vld [vmem:[#allocation4 + $0x238] sm:$0xff]
    %v518 = vld [vmem:[#allocation4 + $0x240] sm:$0xff]
    %v519 = vld [vmem:[#allocation4 + $0x248] sm:$0xff]
    %v520 = vld [vmem:[#allocation4 + $0x250] sm:$0xff]
    %v521 = vld [vmem:[#allocation4 + $0x258] sm:$0xff]
    %v522 = vld [vmem:[#allocation4 + $0x260] sm:$0xff]
    %v523 = vld [vmem:[#allocation4 + $0x268] sm:$0xff]
    %v524 = vld [vmem:[#allocation4 + $0x270] sm:$0xff]
    %v525 = vld [vmem:[#allocation4 + $0x278] sm:$0xff]
    %v526 = vld [vmem:[#allocation4 + $0x280] sm:$0xff]
    %v527 = vld [vmem:[#allocation4 + $0x288] sm:$0xff]
    %v528 = vld [vmem:[#allocation4 + $0x290] sm:$0xff]
    %v529 = vld [vmem:[#allocation4 + $0x298] sm:$0xff]
    %v530 = vld [vmem:[#allocation4 + $0x2a0] sm:$0xff]
    %v531 = vld [vmem:[#allocation4 + $0x2a8] sm:$0xff]
    %v532 = vld [vmem:[#allocation4 + $0x2b0] sm:$0xff]
    %v533 = vld [vmem:[#allocation4 + $0x2b8] sm:$0xff]
    %v534 = vld [vmem:[#allocation4 + $0x2c0] sm:$0xff]
    %v535 = vld [vmem:[#allocation4 + $0x2c8] sm:$0xff]
    %v536 = vld [vmem:[#allocation4 + $0x2d0] sm:$0xff]
    %v537 = vld [vmem:[#allocation4 + $0x2d8] sm:$0xff]
    %v538 = vld [vmem:[#allocation4 + $0x2e0] sm:$0xff]
    %v539 = vld [vmem:[#allocation4 + $0x2e8] sm:$0xff]
    %v540 = vld [vmem:[#allocation4 + $0x2f0] sm:$0xff]
    %v541 = vld [vmem:[#allocation4 + $0x2f8] sm:$0xff]
    %v542 = vld [vmem:[#allocation4 + $0x300] sm:$0xff]
    %v543 = vld [vmem:[#allocation4 + $0x308] sm:$0xff]
    %v544 = vld [vmem:[#allocation4 + $0x310] sm:$0xff]
    %v545 = vld [vmem:[#allocation4 + $0x318] sm:$0xff]
    %v546 = vld [vmem:[#allocation4 + $0x320] sm:$0xff]
    %v547 = vld [vmem:[#allocation4 + $0x328] sm:$0xff]
    %v548 = vld [vmem:[#allocation4 + $0x330] sm:$0xff]
    %v549 = vld [vmem:[#allocation4 + $0x338] sm:$0xff]
    %v550 = vld [vmem:[#allocation4 + $0x340] sm:$0xff]
    %v551 = vld [vmem:[#allocation4 + $0x348] sm:$0xff]
    %v552 = vld [vmem:[#allocation4 + $0x350] sm:$0xff]
    %v553 = vld [vmem:[#allocation4 + $0x358] sm:$0xff]
    %v554 = vld [vmem:[#allocation4 + $0x360] sm:$0xff]
    %v555 = vld [vmem:[#allocation4 + $0x368] sm:$0xff]
    %v556 = vld [vmem:[#allocation4 + $0x370] sm:$0xff]
    %v557 = vld [vmem:[#allocation4 + $0x378] sm:$0xff]
    %v558 = vld [vmem:[#allocation4 + $0x380] sm:$0xff]
    %v559 = vld [vmem:[#allocation4 + $0x388] sm:$0xff]
    %v560 = vld [vmem:[#allocation4 + $0x390] sm:$0xff]
    %v561 = vld [vmem:[#allocation4 + $0x398] sm:$0xff]
    %v562 = vld [vmem:[#allocation4 + $0x3a0] sm:$0xff]
    %v563 = vld [vmem:[#allocation4 + $0x3a8] sm:$0xff]
    %v564 = vld [vmem:[#allocation4 + $0x3b0] sm:$0xff]
    %v565 = vld [vmem:[#allocation4 + $0x3b8] sm:$0xff]
    %v566 = vld [vmem:[#allocation4 + $0x3c0] sm:$0xff]
    %v567 = vld [vmem:[#allocation4 + $0x3c8] sm:$0xff]
    %v568 = vld [vmem:[#allocation4 + $0x3d0] sm:$0xff]
    %v569 = vld [vmem:[#allocation4 + $0x3d8] sm:$0xff]
    %v570 = vld [vmem:[#allocation4 + $0x3e0] sm:$0xff]
    %v571 = vld [vmem:[#allocation4 + $0x3e8] sm:$0xff]
    %v572 = vld [vmem:[#allocation4 + $0x3f0] sm:$0xff]
    %v573 = vld [vmem:[#allocation4 + $0x3f8] sm:$0xff]
    %v574 = vld [vmem:[%s4] sm:$0xf]
    %v576 = vperm.slane %v574, 0
    %v577 = vperm.slane %v574, 1
    %v578 = vperm.slane %v574, 2
    %v579 = vperm.slane %v574, 3
    %584 = vmatpush.msra.mxu0 %v506
    %585 = vmatpush.msra.mxu0 %v502
    %586 = vmatpush.msra.mxu0 %v498
    %587 = vmatpush.msra.mxu0 %v494
    %588 = vmatpush.msra.mxu0 %v490
    %589 = vmatpush.msra.mxu0 %v486
    %590 = vmatpush.msra.mxu0 %v482
    %591 = vmatpush.msra.mxu0 %v478
    %592 = vmatpush.msra.mxu0 %v474
    %593 = vmatpush.msra.mxu0 %v470
    %594 = vmatpush.msra.mxu0 %v466
    %595 = vmatpush.msra.mxu0 %v462
    %596 = vmatpush.msra.mxu0 %v458
    %597 = vmatpush.msra.mxu0 %v454
    %598 = vmatpush.msra.mxu0 %v450
    %599 = vmatpush.msra.mxu0 %v446
    %600 = vmatmul.f32.gmra.mxu0 %v444
    %v601 = vpop.f32.mrf.mxu0
    %v602 = vadd.f32 %v576, %v601
    %603 = vdwg.mxu0
    %604 = vmatpush.msra.mxu0 %v570
    %605 = vmatpush.msra.mxu0 %v566
    %606 = vmatpush.msra.mxu0 %v562
    %607 = vmatpush.msra.mxu0 %v558
    %608 = vmatpush.msra.mxu0 %v554
    %609 = vmatpush.msra.mxu0 %v550
    %610 = vmatpush.msra.mxu0 %v546
    %611 = vmatpush.msra.mxu0 %v542
    %612 = vmatpush.msra.mxu0 %v538
    %613 = vmatpush.msra.mxu0 %v534
    %614 = vmatpush.msra.mxu0 %v530
    %615 = vmatpush.msra.mxu0 %v526
    %616 = vmatpush.msra.mxu0 %v522
    %617 = vmatpush.msra.mxu0 %v518
    %618 = vmatpush.msra.mxu0 %v514
    %619 = vmatpush.msra.mxu0 %v510
    %620 = vmatmul.f32.gmra.mxu0 %v445
    %v621 = vpop.f32.mrf.mxu0
    %v622 = vadd.f32 %v602, %v621
    %623 = vdwg.mxu0
    %624 = vmatpush.msra.mxu0 %v507
    %625 = vmatpush.msra.mxu0 %v503
    %626 = vmatpush.msra.mxu0 %v499
    %627 = vmatpush.msra.mxu0 %v495
    %628 = vmatpush.msra.mxu0 %v491
    %629 = vmatpush.msra.mxu0 %v487
    %630 = vmatpush.msra.mxu0 %v483
    %631 = vmatpush.msra.mxu0 %v479
    %632 = vmatpush.msra.mxu0 %v475
    %633 = vmatpush.msra.mxu0 %v471
    %634 = vmatpush.msra.mxu0 %v467
    %635 = vmatpush.msra.mxu0 %v463
    %636 = vmatpush.msra.mxu0 %v459
    %637 = vmatpush.msra.mxu0 %v455
    %638 = vmatpush.msra.mxu0 %v451
    %639 = vmatpush.msra.mxu0 %v447
    %640 = vmatmul.f32.gmra.mxu0 %v444
    %v641 = vpop.f32.mrf.mxu0
    %v642 = vadd.f32 %v577, %v641
    %643 = vdwg.mxu0
    %644 = vmatpush.msra.mxu0 %v571
    %645 = vmatpush.msra.mxu0 %v567
    %646 = vmatpush.msra.mxu0 %v563
    %647 = vmatpush.msra.mxu0 %v559
    %648 = vmatpush.msra.mxu0 %v555
    %649 = vmatpush.msra.mxu0 %v551
    %650 = vmatpush.msra.mxu0 %v547
    %651 = vmatpush.msra.mxu0 %v543
    %652 = vmatpush.msra.mxu0 %v539
    %653 = vmatpush.msra.mxu0 %v535
    %654 = vmatpush.msra.mxu0 %v531
    %655 = vmatpush.msra.mxu0 %v527
    %656 = vmatpush.msra.mxu0 %v523
    %657 = vmatpush.msra.mxu0 %v519
    %658 = vmatpush.msra.mxu0 %v515
    %659 = vmatpush.msra.mxu0 %v511
    %660 = vmatmul.f32.gmra.mxu0 %v445
    %v661 = vpop.f32.mrf.mxu0
    %v662 = vadd.f32 %v642, %v661
    %663 = vdwg.mxu0
    %664 = vmatpush.msra.mxu0 %v508
    %665 = vmatpush.msra.mxu0 %v504
    %666 = vmatpush.msra.mxu0 %v500
    %667 = vmatpush.msra.mxu0 %v496
    %668 = vmatpush.msra.mxu0 %v492
    %669 = vmatpush.msra.mxu0 %v488
    %670 = vmatpush.msra.mxu0 %v484
    %671 = vmatpush.msra.mxu0 %v480
    %672 = vmatpush.msra.mxu0 %v476
    %673 = vmatpush.msra.mxu0 %v472
    %674 = vmatpush.msra.mxu0 %v468
    %675 = vmatpush.msra.mxu0 %v464
    %676 = vmatpush.msra.mxu0 %v460
    %677 = vmatpush.msra.mxu0 %v456
    %678 = vmatpush.msra.mxu0 %v452
    %679 = vmatpush.msra.mxu0 %v448
    %680 = vmatmul.f32.gmra.mxu0 %v444
    %v681 = vpop.f32.mrf.mxu0
    %v682 = vadd.f32 %v578, %v681
    %683 = vdwg.mxu0
    %684 = vmatpush.msra.mxu0 %v572
    %685 = vmatpush.msra.mxu0 %v568
    %686 = vmatpush.msra.mxu0 %v564
    %687 = vmatpush.msra.mxu0 %v560
    %688 = vmatpush.msra.mxu0 %v556
    %689 = vmatpush.msra.mxu0 %v552
    %690 = vmatpush.msra.mxu0 %v548
    %691 = vmatpush.msra.mxu0 %v544
    %692 = vmatpush.msra.mxu0 %v540
    %693 = vmatpush.msra.mxu0 %v536
    %694 = vmatpush.msra.mxu0 %v532
    %695 = vmatpush.msra.mxu0 %v528
    %696 = vmatpush.msra.mxu0 %v524
    %697 = vmatpush.msra.mxu0 %v520
    %698 = vmatpush.msra.mxu0 %v516
    %699 = vmatpush.msra.mxu0 %v512
    %700 = vmatmul.f32.gmra.mxu0 %v445
    %v701 = vpop.f32.mrf.mxu0
    %v702 = vadd.f32 %v682, %v701
    %703 = vdwg.mxu0
    %704 = vmatpush.msra.mxu0 %v509
    %705 = vmatpush.msra.mxu0 %v505
    %706 = vmatpush.msra.mxu0 %v501
    %707 = vmatpush.msra.mxu0 %v497
    %708 = vmatpush.msra.mxu0 %v493
    %709 = vmatpush.msra.mxu0 %v489
    %710 = vmatpush.msra.mxu0 %v485
    %711 = vmatpush.msra.mxu0 %v481
    %712 = vmatpush.msra.mxu0 %v477
    %713 = vmatpush.msra.mxu0 %v473
    %714 = vmatpush.msra.mxu0 %v469
    %715 = vmatpush.msra.mxu0 %v465
    %716 = vmatpush.msra.mxu0 %v461
    %717 = vmatpush.msra.mxu0 %v457
    %718 = vmatpush.msra.mxu0 %v453
    %719 = vmatpush.msra.mxu0 %v449
    %720 = vmatmul.f32.gmra.mxu0 %v444
    %v721 = vpop.f32.mrf.mxu0
    %v722 = vadd.f32 %v579, %v721
    %723 = vdwg.mxu0
    %724 = vmatpush.msra.mxu0 %v573
    %725 = vmatpush.msra.mxu0 %v569
    %726 = vmatpush.msra.mxu0 %v565
    %727 = vmatpush.msra.mxu0 %v561
    %728 = vmatpush.msra.mxu0 %v557
    %729 = vmatpush.msra.mxu0 %v553
    %730 = vmatpush.msra.mxu0 %v549
    %731 = vmatpush.msra.mxu0 %v545
    %732 = vmatpush.msra.mxu0 %v541
    %733 = vmatpush.msra.mxu0 %v537
    %734 = vmatpush.msra.mxu0 %v533
    %735 = vmatpush.msra.mxu0 %v529
    %736 = vmatpush.msra.mxu0 %v525
    %737 = vmatpush.msra.mxu0 %v521
    %738 = vmatpush.msra.mxu0 %v517
    %739 = vmatpush.msra.mxu0 %v513
    %740 = vmatmul.f32.gmra.mxu0 %v445
    %v741 = vpop.f32.mrf.mxu0
    %v742 = vadd.f32 %v722, %v741
    %743 = vdwg.mxu0
    %v744 = vmax.f32 %v622, 0.0
    %v745 = vmax.f32 %v662, 0.0
    %v746 = vmax.f32 %v702, 0.0
    %v747 = vmax.f32 %v742, 0.0
    %v748 = vld [vmem:[#allocation6] sm:$0xff]
    %v749 = vld [vmem:[#allocation6 + $0x8] sm:$0xff]
    %v750 = vld [vmem:[#allocation6 + $0x10] sm:$0xff]
    %v751 = vld [vmem:[#allocation6 + $0x18] sm:$0xff]
    %v752 = vld [vmem:[#allocation6 + $0x20] sm:$0xff]
    %v753 = vld [vmem:[#allocation6 + $0x28] sm:$0xff]
    %v754 = vld [vmem:[#allocation6 + $0x30] sm:$0xff]
    %v755 = vld [vmem:[#allocation6 + $0x38] sm:$0xff]
    %v756 = vld [vmem:[#allocation6 + $0x40] sm:$0xff]
    %v757 = vld [vmem:[#allocation6 + $0x48] sm:$0xff]
    %v758 = vld [vmem:[#allocation6 + $0x50] sm:$0xff]
    %v759 = vld [vmem:[#allocation6 + $0x58] sm:$0xff]
    %v760 = vld [vmem:[#allocation6 + $0x60] sm:$0xff]
    %v761 = vld [vmem:[#allocation6 + $0x68] sm:$0xff]
    %v762 = vld [vmem:[#allocation6 + $0x70] sm:$0xff]
    %v763 = vld [vmem:[#allocation6 + $0x78] sm:$0xff]
    %v764 = vld [vmem:[#allocation6 + $0x80] sm:$0xff]
    %v765 = vld [vmem:[#allocation6 + $0x88] sm:$0xff]
    %v766 = vld [vmem:[#allocation6 + $0x90] sm:$0xff]
    %v767 = vld [vmem:[#allocation6 + $0x98] sm:$0xff]
    %v768 = vld [vmem:[#allocation6 + $0xa0] sm:$0xff]
    %v769 = vld [vmem:[#allocation6 + $0xa8] sm:$0xff]
    %v770 = vld [vmem:[#allocation6 + $0xb0] sm:$0xff]
    %v771 = vld [vmem:[#allocation6 + $0xb8] sm:$0xff]
    %v772 = vld [vmem:[#allocation6 + $0xc0] sm:$0xff]
    %v773 = vld [vmem:[#allocation6 + $0xc8] sm:$0xff]
    %v774 = vld [vmem:[#allocation6 + $0xd0] sm:$0xff]
    %v775 = vld [vmem:[#allocation6 + $0xd8] sm:$0xff]
    %v776 = vld [vmem:[#allocation6 + $0xe0] sm:$0xff]
    %v777 = vld [vmem:[#allocation6 + $0xe8] sm:$0xff]
    %v778 = vld [vmem:[#allocation6 + $0xf0] sm:$0xff]
    %v779 = vld [vmem:[#allocation6 + $0xf8] sm:$0xff]
    %v780 = vld [vmem:[#allocation6 + $0x100] sm:$0xff]
    %v781 = vld [vmem:[#allocation6 + $0x108] sm:$0xff]
    %v782 = vld [vmem:[#allocation6 + $0x110] sm:$0xff]
    %v783 = vld [vmem:[#allocation6 + $0x118] sm:$0xff]
    %v784 = vld [vmem:[#allocation6 + $0x120] sm:$0xff]
    %v785 = vld [vmem:[#allocation6 + $0x128] sm:$0xff]
    %v786 = vld [vmem:[#allocation6 + $0x130] sm:$0xff]
    %v787 = vld [vmem:[#allocation6 + $0x138] sm:$0xff]
    %v788 = vld [vmem:[#allocation6 + $0x140] sm:$0xff]
    %v789 = vld [vmem:[#allocation6 + $0x148] sm:$0xff]
    %v790 = vld [vmem:[#allocation6 + $0x150] sm:$0xff]
    %v791 = vld [vmem:[#allocation6 + $0x158] sm:$0xff]
    %v792 = vld [vmem:[#allocation6 + $0x160] sm:$0xff]
    %v793 = vld [vmem:[#allocation6 + $0x168] sm:$0xff]
    %v794 = vld [vmem:[#allocation6 + $0x170] sm:$0xff]
    %v795 = vld [vmem:[#allocation6 + $0x178] sm:$0xff]
    %v796 = vld [vmem:[#allocation6 + $0x180] sm:$0xff]
    %v797 = vld [vmem:[#allocation6 + $0x188] sm:$0xff]
    %v798 = vld [vmem:[#allocation6 + $0x190] sm:$0xff]
    %v799 = vld [vmem:[#allocation6 + $0x198] sm:$0xff]
    %v800 = vld [vmem:[#allocation6 + $0x1a0] sm:$0xff]
    %v801 = vld [vmem:[#allocation6 + $0x1a8] sm:$0xff]
    %v802 = vld [vmem:[#allocation6 + $0x1b0] sm:$0xff]
    %v803 = vld [vmem:[#allocation6 + $0x1b8] sm:$0xff]
    %v804 = vld [vmem:[#allocation6 + $0x1c0] sm:$0xff]
    %v805 = vld [vmem:[#allocation6 + $0x1c8] sm:$0xff]
    %v806 = vld [vmem:[#allocation6 + $0x1d0] sm:$0xff]
    %v807 = vld [vmem:[#allocation6 + $0x1d8] sm:$0xff]
    %v808 = vld [vmem:[#allocation6 + $0x1e0] sm:$0xff]
    %v809 = vld [vmem:[#allocation6 + $0x1e8] sm:$0xff]
    %v810 = vld [vmem:[#allocation6 + $0x1f0] sm:$0xff]
    %v811 = vld [vmem:[#allocation6 + $0x1f8] sm:$0xff]
    %v812 = vld [vmem:[#allocation6 + $0x200] sm:$0xff]
    %v813 = vld [vmem:[#allocation6 + $0x208] sm:$0xff]
    %v814 = vld [vmem:[#allocation6 + $0x210] sm:$0xff]
    %v815 = vld [vmem:[#allocation6 + $0x218] sm:$0xff]
    %v816 = vld [vmem:[#allocation6 + $0x220] sm:$0xff]
    %v817 = vld [vmem:[#allocation6 + $0x228] sm:$0xff]
    %v818 = vld [vmem:[#allocation6 + $0x230] sm:$0xff]
    %v819 = vld [vmem:[#allocation6 + $0x238] sm:$0xff]
    %v820 = vld [vmem:[#allocation6 + $0x240] sm:$0xff]
    %v821 = vld [vmem:[#allocation6 + $0x248] sm:$0xff]
    %v822 = vld [vmem:[#allocation6 + $0x250] sm:$0xff]
    %v823 = vld [vmem:[#allocation6 + $0x258] sm:$0xff]
    %v824 = vld [vmem:[#allocation6 + $0x260] sm:$0xff]
    %v825 = vld [vmem:[#allocation6 + $0x268] sm:$0xff]
    %v826 = vld [vmem:[#allocation6 + $0x270] sm:$0xff]
    %v827 = vld [vmem:[#allocation6 + $0x278] sm:$0xff]
    %v828 = vld [vmem:[#allocation6 + $0x280] sm:$0xff]
    %v829 = vld [vmem:[#allocation6 + $0x288] sm:$0xff]
    %v830 = vld [vmem:[#allocation6 + $0x290] sm:$0xff]
    %v831 = vld [vmem:[#allocation6 + $0x298] sm:$0xff]
    %v832 = vld [vmem:[#allocation6 + $0x2a0] sm:$0xff]
    %v833 = vld [vmem:[#allocation6 + $0x2a8] sm:$0xff]
    %v834 = vld [vmem:[#allocation6 + $0x2b0] sm:$0xff]
    %v835 = vld [vmem:[#allocation6 + $0x2b8] sm:$0xff]
    %v836 = vld [vmem:[#allocation6 + $0x2c0] sm:$0xff]
    %v837 = vld [vmem:[#allocation6 + $0x2c8] sm:$0xff]
    %v838 = vld [vmem:[#allocation6 + $0x2d0] sm:$0xff]
    %v839 = vld [vmem:[#allocation6 + $0x2d8] sm:$0xff]
    %v840 = vld [vmem:[#allocation6 + $0x2e0] sm:$0xff]
    %v841 = vld [vmem:[#allocation6 + $0x2e8] sm:$0xff]
    %v842 = vld [vmem:[#allocation6 + $0x2f0] sm:$0xff]
    %v843 = vld [vmem:[#allocation6 + $0x2f8] sm:$0xff]
    %v844 = vld [vmem:[#allocation6 + $0x300] sm:$0xff]
    %v845 = vld [vmem:[#allocation6 + $0x308] sm:$0xff]
    %v846 = vld [vmem:[#allocation6 + $0x310] sm:$0xff]
    %v847 = vld [vmem:[#allocation6 + $0x318] sm:$0xff]
    %v848 = vld [vmem:[#allocation6 + $0x320] sm:$0xff]
    %v849 = vld [vmem:[#allocation6 + $0x328] sm:$0xff]
    %v850 = vld [vmem:[#allocation6 + $0x330] sm:$0xff]
    %v851 = vld [vmem:[#allocation6 + $0x338] sm:$0xff]
    %v852 = vld [vmem:[#allocation6 + $0x340] sm:$0xff]
    %v853 = vld [vmem:[#allocation6 + $0x348] sm:$0xff]
    %v854 = vld [vmem:[#allocation6 + $0x350] sm:$0xff]
    %v855 = vld [vmem:[#allocation6 + $0x358] sm:$0xff]
    %v856 = vld [vmem:[#allocation6 + $0x360] sm:$0xff]
    %v857 = vld [vmem:[#allocation6 + $0x368] sm:$0xff]
    %v858 = vld [vmem:[#allocation6 + $0x370] sm:$0xff]
    %v859 = vld [vmem:[#allocation6 + $0x378] sm:$0xff]
    %v860 = vld [vmem:[#allocation6 + $0x380] sm:$0xff]
    %v861 = vld [vmem:[#allocation6 + $0x388] sm:$0xff]
    %v862 = vld [vmem:[#allocation6 + $0x390] sm:$0xff]
    %v863 = vld [vmem:[#allocation6 + $0x398] sm:$0xff]
    %v864 = vld [vmem:[#allocation6 + $0x3a0] sm:$0xff]
    %v865 = vld [vmem:[#allocation6 + $0x3a8] sm:$0xff]
    %v866 = vld [vmem:[#allocation6 + $0x3b0] sm:$0xff]
    %v867 = vld [vmem:[#allocation6 + $0x3b8] sm:$0xff]
    %v868 = vld [vmem:[#allocation6 + $0x3c0] sm:$0xff]
    %v869 = vld [vmem:[#allocation6 + $0x3c8] sm:$0xff]
    %v870 = vld [vmem:[#allocation6 + $0x3d0] sm:$0xff]
    %v871 = vld [vmem:[#allocation6 + $0x3d8] sm:$0xff]
    %v872 = vld [vmem:[#allocation6 + $0x3e0] sm:$0xff]
    %v873 = vld [vmem:[#allocation6 + $0x3e8] sm:$0xff]
    %v874 = vld [vmem:[#allocation6 + $0x3f0] sm:$0xff]
    %v875 = vld [vmem:[#allocation6 + $0x3f8] sm:$0xff]
    %v876 = vld [vmem:[#allocation6 + $0x400] sm:$0xff]
    %v877 = vld [vmem:[#allocation6 + $0x408] sm:$0xff]
    %v878 = vld [vmem:[#allocation6 + $0x410] sm:$0xff]
    %v879 = vld [vmem:[#allocation6 + $0x418] sm:$0xff]
    %v880 = vld [vmem:[#allocation6 + $0x420] sm:$0xff]
    %v881 = vld [vmem:[#allocation6 + $0x428] sm:$0xff]
    %v882 = vld [vmem:[#allocation6 + $0x430] sm:$0xff]
    %v883 = vld [vmem:[#allocation6 + $0x438] sm:$0xff]
    %v884 = vld [vmem:[#allocation6 + $0x440] sm:$0xff]
    %v885 = vld [vmem:[#allocation6 + $0x448] sm:$0xff]
    %v886 = vld [vmem:[#allocation6 + $0x450] sm:$0xff]
    %v887 = vld [vmem:[#allocation6 + $0x458] sm:$0xff]
    %v888 = vld [vmem:[#allocation6 + $0x460] sm:$0xff]
    %v889 = vld [vmem:[#allocation6 + $0x468] sm:$0xff]
    %v890 = vld [vmem:[#allocation6 + $0x470] sm:$0xff]
    %v891 = vld [vmem:[#allocation6 + $0x478] sm:$0xff]
    %v892 = vld [vmem:[#allocation6 + $0x480] sm:$0xff]
    %v893 = vld [vmem:[#allocation6 + $0x488] sm:$0xff]
    %v894 = vld [vmem:[#allocation6 + $0x490] sm:$0xff]
    %v895 = vld [vmem:[#allocation6 + $0x498] sm:$0xff]
    %v896 = vld [vmem:[#allocation6 + $0x4a0] sm:$0xff]
    %v897 = vld [vmem:[#allocation6 + $0x4a8] sm:$0xff]
    %v898 = vld [vmem:[#allocation6 + $0x4b0] sm:$0xff]
    %v899 = vld [vmem:[#allocation6 + $0x4b8] sm:$0xff]
    %v900 = vld [vmem:[#allocation6 + $0x4c0] sm:$0xff]
    %v901 = vld [vmem:[#allocation6 + $0x4c8] sm:$0xff]
    %v902 = vld [vmem:[#allocation6 + $0x4d0] sm:$0xff]
    %v903 = vld [vmem:[#allocation6 + $0x4d8] sm:$0xff]
    %v904 = vld [vmem:[#allocation6 + $0x4e0] sm:$0xff]
    %v905 = vld [vmem:[#allocation6 + $0x4e8] sm:$0xff]
    %v906 = vld [vmem:[#allocation6 + $0x4f0] sm:$0xff]
    %v907 = vld [vmem:[#allocation6 + $0x4f8] sm:$0xff]
    %v908 = vld [vmem:[#allocation6 + $0x500] sm:$0xff]
    %v909 = vld [vmem:[#allocation6 + $0x508] sm:$0xff]
    %v910 = vld [vmem:[#allocation6 + $0x510] sm:$0xff]
    %v911 = vld [vmem:[#allocation6 + $0x518] sm:$0xff]
    %v912 = vld [vmem:[#allocation6 + $0x520] sm:$0xff]
    %v913 = vld [vmem:[#allocation6 + $0x528] sm:$0xff]
    %v914 = vld [vmem:[#allocation6 + $0x530] sm:$0xff]
    %v915 = vld [vmem:[#allocation6 + $0x538] sm:$0xff]
    %v916 = vld [vmem:[#allocation6 + $0x540] sm:$0xff]
    %v917 = vld [vmem:[#allocation6 + $0x548] sm:$0xff]
    %v918 = vld [vmem:[#allocation6 + $0x550] sm:$0xff]
    %v919 = vld [vmem:[#allocation6 + $0x558] sm:$0xff]
    %v920 = vld [vmem:[#allocation6 + $0x560] sm:$0xff]
    %v921 = vld [vmem:[#allocation6 + $0x568] sm:$0xff]
    %v922 = vld [vmem:[#allocation6 + $0x570] sm:$0xff]
    %v923 = vld [vmem:[#allocation6 + $0x578] sm:$0xff]
    %v924 = vld [vmem:[#allocation6 + $0x580] sm:$0xff]
    %v925 = vld [vmem:[#allocation6 + $0x588] sm:$0xff]
    %v926 = vld [vmem:[#allocation6 + $0x590] sm:$0xff]
    %v927 = vld [vmem:[#allocation6 + $0x598] sm:$0xff]
    %v928 = vld [vmem:[#allocation6 + $0x5a0] sm:$0xff]
    %v929 = vld [vmem:[#allocation6 + $0x5a8] sm:$0xff]
    %v930 = vld [vmem:[#allocation6 + $0x5b0] sm:$0xff]
    %v931 = vld [vmem:[#allocation6 + $0x5b8] sm:$0xff]
    %v932 = vld [vmem:[#allocation6 + $0x5c0] sm:$0xff]
    %v933 = vld [vmem:[#allocation6 + $0x5c8] sm:$0xff]
    %v934 = vld [vmem:[#allocation6 + $0x5d0] sm:$0xff]
    %v935 = vld [vmem:[#allocation6 + $0x5d8] sm:$0xff]
    %v936 = vld [vmem:[#allocation6 + $0x5e0] sm:$0xff]
    %v937 = vld [vmem:[#allocation6 + $0x5e8] sm:$0xff]
    %v938 = vld [vmem:[#allocation6 + $0x5f0] sm:$0xff]
    %v939 = vld [vmem:[#allocation6 + $0x5f8] sm:$0xff]
    %v940 = vld [vmem:[#allocation6 + $0x600] sm:$0xff]
    %v941 = vld [vmem:[#allocation6 + $0x608] sm:$0xff]
    %v942 = vld [vmem:[#allocation6 + $0x610] sm:$0xff]
    %v943 = vld [vmem:[#allocation6 + $0x618] sm:$0xff]
    %v944 = vld [vmem:[#allocation6 + $0x620] sm:$0xff]
    %v945 = vld [vmem:[#allocation6 + $0x628] sm:$0xff]
    %v946 = vld [vmem:[#allocation6 + $0x630] sm:$0xff]
    %v947 = vld [vmem:[#allocation6 + $0x638] sm:$0xff]
    %v948 = vld [vmem:[#allocation6 + $0x640] sm:$0xff]
    %v949 = vld [vmem:[#allocation6 + $0x648] sm:$0xff]
    %v950 = vld [vmem:[#allocation6 + $0x650] sm:$0xff]
    %v951 = vld [vmem:[#allocation6 + $0x658] sm:$0xff]
    %v952 = vld [vmem:[#allocation6 + $0x660] sm:$0xff]
    %v953 = vld [vmem:[#allocation6 + $0x668] sm:$0xff]
    %v954 = vld [vmem:[#allocation6 + $0x670] sm:$0xff]
    %v955 = vld [vmem:[#allocation6 + $0x678] sm:$0xff]
    %v956 = vld [vmem:[#allocation6 + $0x680] sm:$0xff]
    %v957 = vld [vmem:[#allocation6 + $0x688] sm:$0xff]
    %v958 = vld [vmem:[#allocation6 + $0x690] sm:$0xff]
    %v959 = vld [vmem:[#allocation6 + $0x698] sm:$0xff]
    %v960 = vld [vmem:[#allocation6 + $0x6a0] sm:$0xff]
    %v961 = vld [vmem:[#allocation6 + $0x6a8] sm:$0xff]
    %v962 = vld [vmem:[#allocation6 + $0x6b0] sm:$0xff]
    %v963 = vld [vmem:[#allocation6 + $0x6b8] sm:$0xff]
    %v964 = vld [vmem:[#allocation6 + $0x6c0] sm:$0xff]
    %v965 = vld [vmem:[#allocation6 + $0x6c8] sm:$0xff]
    %v966 = vld [vmem:[#allocation6 + $0x6d0] sm:$0xff]
    %v967 = vld [vmem:[#allocation6 + $0x6d8] sm:$0xff]
    %v968 = vld [vmem:[#allocation6 + $0x6e0] sm:$0xff]
    %v969 = vld [vmem:[#allocation6 + $0x6e8] sm:$0xff]
    %v970 = vld [vmem:[#allocation6 + $0x6f0] sm:$0xff]
    %v971 = vld [vmem:[#allocation6 + $0x6f8] sm:$0xff]
    %v972 = vld [vmem:[#allocation6 + $0x700] sm:$0xff]
    %v973 = vld [vmem:[#allocation6 + $0x708] sm:$0xff]
    %v974 = vld [vmem:[#allocation6 + $0x710] sm:$0xff]
    %v975 = vld [vmem:[#allocation6 + $0x718] sm:$0xff]
    %v976 = vld [vmem:[#allocation6 + $0x720] sm:$0xff]
    %v977 = vld [vmem:[#allocation6 + $0x728] sm:$0xff]
    %v978 = vld [vmem:[#allocation6 + $0x730] sm:$0xff]
    %v979 = vld [vmem:[#allocation6 + $0x738] sm:$0xff]
    %v980 = vld [vmem:[#allocation6 + $0x740] sm:$0xff]
    %v981 = vld [vmem:[#allocation6 + $0x748] sm:$0xff]
    %v982 = vld [vmem:[#allocation6 + $0x750] sm:$0xff]
    %v983 = vld [vmem:[#allocation6 + $0x758] sm:$0xff]
    %v984 = vld [vmem:[#allocation6 + $0x760] sm:$0xff]
    %v985 = vld [vmem:[#allocation6 + $0x768] sm:$0xff]
    %v986 = vld [vmem:[#allocation6 + $0x770] sm:$0xff]
    %v987 = vld [vmem:[#allocation6 + $0x778] sm:$0xff]
    %v988 = vld [vmem:[#allocation6 + $0x780] sm:$0xff]
    %v989 = vld [vmem:[#allocation6 + $0x788] sm:$0xff]
    %v990 = vld [vmem:[#allocation6 + $0x790] sm:$0xff]
    %v991 = vld [vmem:[#allocation6 + $0x798] sm:$0xff]
    %v992 = vld [vmem:[#allocation6 + $0x7a0] sm:$0xff]
    %v993 = vld [vmem:[#allocation6 + $0x7a8] sm:$0xff]
    %v994 = vld [vmem:[#allocation6 + $0x7b0] sm:$0xff]
    %v995 = vld [vmem:[#allocation6 + $0x7b8] sm:$0xff]
    %v996 = vld [vmem:[#allocation6 + $0x7c0] sm:$0xff]
    %v997 = vld [vmem:[#allocation6 + $0x7c8] sm:$0xff]
    %v998 = vld [vmem:[#allocation6 + $0x7d0] sm:$0xff]
    %v999 = vld [vmem:[#allocation6 + $0x7d8] sm:$0xff]
    %v1000 = vld [vmem:[#allocation6 + $0x7e0] sm:$0xff]
    %v1001 = vld [vmem:[#allocation6 + $0x7e8] sm:$0xff]
    %v1002 = vld [vmem:[#allocation6 + $0x7f0] sm:$0xff]
    %v1003 = vld [vmem:[#allocation6 + $0x7f8] sm:$0xff]
    %v1004 = vld [vmem:[%s6] sm:$0xf]
    %v1006 = vperm.slane %v1004, 0
    %v1007 = vperm.slane %v1004, 1
    %v1008 = vperm.slane %v1004, 2
    %v1009 = vperm.slane %v1004, 3
    %1014 = vmatpush.msra.mxu0 %v808
    %1015 = vmatpush.msra.mxu0 %v804
    %1016 = vmatpush.msra.mxu0 %v800
    %1017 = vmatpush.msra.mxu0 %v796
    %1018 = vmatpush.msra.mxu0 %v792
    %1019 = vmatpush.msra.mxu0 %v788
    %1020 = vmatpush.msra.mxu0 %v784
    %1021 = vmatpush.msra.mxu0 %v780
    %1022 = vmatpush.msra.mxu0 %v776
    %1023 = vmatpush.msra.mxu0 %v772
    %1024 = vmatpush.msra.mxu0 %v768
    %1025 = vmatpush.msra.mxu0 %v764
    %1026 = vmatpush.msra.mxu0 %v760
    %1027 = vmatpush.msra.mxu0 %v756
    %1028 = vmatpush.msra.mxu0 %v752
    %1029 = vmatpush.msra.mxu0 %v748
    %1030 = vmatmul.f32.gmra.mxu0 %v744
    %v1031 = vpop.f32.mrf.mxu0
    %v1032 = vadd.f32 %v1006, %v1031
    %1033 = vdwg.mxu0
    %1034 = vmatpush.msra.mxu0 %v872
    %1035 = vmatpush.msra.mxu0 %v868
    %1036 = vmatpush.msra.mxu0 %v864
    %1037 = vmatpush.msra.mxu0 %v860
    %1038 = vmatpush.msra.mxu0 %v856
    %1039 = vmatpush.msra.mxu0 %v852
    %1040 = vmatpush.msra.mxu0 %v848
    %1041 = vmatpush.msra.mxu0 %v844
    %1042 = vmatpush.msra.mxu0 %v840
    %1043 = vmatpush.msra.mxu0 %v836
    %1044 = vmatpush.msra.mxu0 %v832
    %1045 = vmatpush.msra.mxu0 %v828
    %1046 = vmatpush.msra.mxu0 %v824
    %1047 = vmatpush.msra.mxu0 %v820
    %1048 = vmatpush.msra.mxu0 %v816
    %1049 = vmatpush.msra.mxu0 %v812
    %1050 = vmatmul.f32.gmra.mxu0 %v745
    %v1051 = vpop.f32.mrf.mxu0
    %v1052 = vadd.f32 %v1032, %v1051
    %1053 = vdwg.mxu0
    %1054 = vmatpush.msra.mxu0 %v936
    %1055 = vmatpush.msra.mxu0 %v932
    %1056 = vmatpush.msra.mxu0 %v928
    %1057 = vmatpush.msra.mxu0 %v924
    %1058 = vmatpush.msra.mxu0 %v920
    %1059 = vmatpush.msra.mxu0 %v916
    %1060 = vmatpush.msra.mxu0 %v912
    %1061 = vmatpush.msra.mxu0 %v908
    %1062 = vmatpush.msra.mxu0 %v904
    %1063 = vmatpush.msra.mxu0 %v900
    %1064 = vmatpush.msra.mxu0 %v896
    %1065 = vmatpush.msra.mxu0 %v892
    %1066 = vmatpush.msra.mxu0 %v888
    %1067 = vmatpush.msra.mxu0 %v884
    %1068 = vmatpush.msra.mxu0 %v880
    %1069 = vmatpush.msra.mxu0 %v876
    %1070 = vmatmul.f32.gmra.mxu0 %v746
    %v1071 = vpop.f32.mrf.mxu0
    %v1072 = vadd.f32 %v1052, %v1071
    %1073 = vdwg.mxu0
    %1074 = vmatpush.msra.mxu0 %v1000
    %1075 = vmatpush.msra.mxu0 %v996
    %1076 = vmatpush.msra.mxu0 %v992
    %1077 = vmatpush.msra.mxu0 %v988
    %1078 = vmatpush.msra.mxu0 %v984
    %1079 = vmatpush.msra.mxu0 %v980
    %1080 = vmatpush.msra.mxu0 %v976
    %1081 = vmatpush.msra.mxu0 %v972
    %1082 = vmatpush.msra.mxu0 %v968
    %1083 = vmatpush.msra.mxu0 %v964
    %1084 = vmatpush.msra.mxu0 %v960
    %1085 = vmatpush.msra.mxu0 %v956
    %1086 = vmatpush.msra.mxu0 %v952
    %1087 = vmatpush.msra.mxu0 %v948
    %1088 = vmatpush.msra.mxu0 %v944
    %1089 = vmatpush.msra.mxu0 %v940
    %1090 = vmatmul.f32.gmra.mxu0 %v747
    %v1091 = vpop.f32.mrf.mxu0
    %v1092 = vadd.f32 %v1072, %v1091
    %1093 = vdwg.mxu0
    %1094 = vmatpush.msra.mxu0 %v809
    %1095 = vmatpush.msra.mxu0 %v805
    %1096 = vmatpush.msra.mxu0 %v801
    %1097 = vmatpush.msra.mxu0 %v797
    %1098 = vmatpush.msra.mxu0 %v793
    %1099 = vmatpush.msra.mxu0 %v789
    %1100 = vmatpush.msra.mxu0 %v785
    %1101 = vmatpush.msra.mxu0 %v781
    %1102 = vmatpush.msra.mxu0 %v777
    %1103 = vmatpush.msra.mxu0 %v773
    %1104 = vmatpush.msra.mxu0 %v769
    %1105 = vmatpush.msra.mxu0 %v765
    %1106 = vmatpush.msra.mxu0 %v761
    %1107 = vmatpush.msra.mxu0 %v757
    %1108 = vmatpush.msra.mxu0 %v753
    %1109 = vmatpush.msra.mxu0 %v749
    %1110 = vmatmul.f32.gmra.mxu0 %v744
    %v1111 = vpop.f32.mrf.mxu0
    %v1112 = vadd.f32 %v1007, %v1111
    %1113 = vdwg.mxu0
    %1114 = vmatpush.msra.mxu0 %v873
    %1115 = vmatpush.msra.mxu0 %v869
    %1116 = vmatpush.msra.mxu0 %v865
    %1117 = vmatpush.msra.mxu0 %v861
    %1118 = vmatpush.msra.mxu0 %v857
    %1119 = vmatpush.msra.mxu0 %v853
    %1120 = vmatpush.msra.mxu0 %v849
    %1121 = vmatpush.msra.mxu0 %v845
    %1122 = vmatpush.msra.mxu0 %v841
    %1123 = vmatpush.msra.mxu0 %v837
    %1124 = vmatpush.msra.mxu0 %v833
    %1125 = vmatpush.msra.mxu0 %v829
    %1126 = vmatpush.msra.mxu0 %v825
    %1127 = vmatpush.msra.mxu0 %v821
    %1128 = vmatpush.msra.mxu0 %v817
    %1129 = vmatpush.msra.mxu0 %v813
    %1130 = vmatmul.f32.gmra.mxu0 %v745
    %v1131 = vpop.f32.mrf.mxu0
    %v1132 = vadd.f32 %v1112, %v1131
    %1133 = vdwg.mxu0
    %1134 = vmatpush.msra.mxu0 %v937
    %1135 = vmatpush.msra.mxu0 %v933
    %1136 = vmatpush.msra.mxu0 %v929
    %1137 = vmatpush.msra.mxu0 %v925
    %1138 = vmatpush.msra.mxu0 %v921
    %1139 = vmatpush.msra.mxu0 %v917
    %1140 = vmatpush.msra.mxu0 %v913
    %1141 = vmatpush.msra.mxu0 %v909
    %1142 = vmatpush.msra.mxu0 %v905
    %1143 = vmatpush.msra.mxu0 %v901
    %1144 = vmatpush.msra.mxu0 %v897
    %1145 = vmatpush.msra.mxu0 %v893
    %1146 = vmatpush.msra.mxu0 %v889
    %1147 = vmatpush.msra.mxu0 %v885
    %1148 = vmatpush.msra.mxu0 %v881
    %1149 = vmatpush.msra.mxu0 %v877
    %1150 = vmatmul.f32.gmra.mxu0 %v746
    %v1151 = vpop.f32.mrf.mxu0
    %v1152 = vadd.f32 %v1132, %v1151
    %1153 = vdwg.mxu0
    %1154 = vmatpush.msra.mxu0 %v1001
    %1155 = vmatpush.msra.mxu0 %v997
    %1156 = vmatpush.msra.mxu0 %v993
    %1157 = vmatpush.msra.mxu0 %v989
    %1158 = vmatpush.msra.mxu0 %v985
    %1159 = vmatpush.msra.mxu0 %v981
    %1160 = vmatpush.msra.mxu0 %v977
    %1161 = vmatpush.msra.mxu0 %v973
    %1162 = vmatpush.msra.mxu0 %v969
    %1163 = vmatpush.msra.mxu0 %v965
    %1164 = vmatpush.msra.mxu0 %v961
    %1165 = vmatpush.msra.mxu0 %v957
    %1166 = vmatpush.msra.mxu0 %v953
    %1167 = vmatpush.msra.mxu0 %v949
    %1168 = vmatpush.msra.mxu0 %v945
    %1169 = vmatpush.msra.mxu0 %v941
    %1170 = vmatmul.f32.gmra.mxu0 %v747
    %v1171 = vpop.f32.mrf.mxu0
    %v1172 = vadd.f32 %v1152, %v1171
    %1173 = vdwg.mxu0
    %1174 = vmatpush.msra.mxu0 %v810
    %1175 = vmatpush.msra.mxu0 %v806
    %1176 = vmatpush.msra.mxu0 %v802
    %1177 = vmatpush.msra.mxu0 %v798
    %1178 = vmatpush.msra.mxu0 %v794
    %1179 = vmatpush.msra.mxu0 %v790
    %1180 = vmatpush.msra.mxu0 %v786
    %1181 = vmatpush.msra.mxu0 %v782
    %1182 = vmatpush.msra.mxu0 %v778
    %1183 = vmatpush.msra.mxu0 %v774
    %1184 = vmatpush.msra.mxu0 %v770
    %1185 = vmatpush.msra.mxu0 %v766
    %1186 = vmatpush.msra.mxu0 %v762
    %1187 = vmatpush.msra.mxu0 %v758
    %1188 = vmatpush.msra.mxu0 %v754
    %1189 = vmatpush.msra.mxu0 %v750
    %1190 = vmatmul.f32.gmra.mxu0 %v744
    %v1191 = vpop.f32.mrf.mxu0
    %v1192 = vadd.f32 %v1008, %v1191
    %1193 = vdwg.mxu0
    %1194 = vmatpush.msra.mxu0 %v874
    %1195 = vmatpush.msra.mxu0 %v870
    %1196 = vmatpush.msra.mxu0 %v866
    %1197 = vmatpush.msra.mxu0 %v862
    %1198 = vmatpush.msra.mxu0 %v858
    %1199 = vmatpush.msra.mxu0 %v854
    %1200 = vmatpush.msra.mxu0 %v850
    %1201 = vmatpush.msra.mxu0 %v846
    %1202 = vmatpush.msra.mxu0 %v842
    %1203 = vmatpush.msra.mxu0 %v838
    %1204 = vmatpush.msra.mxu0 %v834
    %1205 = vmatpush.msra.mxu0 %v830
    %1206 = vmatpush.msra.mxu0 %v826
    %1207 = vmatpush.msra.mxu0 %v822
    %1208 = vmatpush.msra.mxu0 %v818
    %1209 = vmatpush.msra.mxu0 %v814
    %1210 = vmatmul.f32.gmra.mxu0 %v745
    %v1211 = vpop.f32.mrf.mxu0
    %v1212 = vadd.f32 %v1192, %v1211
    %1213 = vdwg.mxu0
    %1214 = vmatpush.msra.mxu0 %v938
    %1215 = vmatpush.msra.mxu0 %v934
    %1216 = vmatpush.msra.mxu0 %v930
    %1217 = vmatpush.msra.mxu0 %v926
    %1218 = vmatpush.msra.mxu0 %v922
    %1219 = vmatpush.msra.mxu0 %v918
    %1220 = vmatpush.msra.mxu0 %v914
    %1221 = vmatpush.msra.mxu0 %v910
    %1222 = vmatpush.msra.mxu0 %v906
    %1223 = vmatpush.msra.mxu0 %v902
    %1224 = vmatpush.msra.mxu0 %v898
    %1225 = vmatpush.msra.mxu0 %v894
    %1226 = vmatpush.msra.mxu0 %v890
    %1227 = vmatpush.msra.mxu0 %v886
    %1228 = vmatpush.msra.mxu0 %v882
    %1229 = vmatpush.msra.mxu0 %v878
    %1230 = vmatmul.f32.gmra.mxu0 %v746
    %v1231 = vpop.f32.mrf.mxu0
    %v1232 = vadd.f32 %v1212, %v1231
    %1233 = vdwg.mxu0
    %1234 = vmatpush.msra.mxu0 %v1002
    %1235 = vmatpush.msra.mxu0 %v998
    %1236 = vmatpush.msra.mxu0 %v994
    %1237 = vmatpush.msra.mxu0 %v990
    %1238 = vmatpush.msra.mxu0 %v986
    %1239 = vmatpush.msra.mxu0 %v982
    %1240 = vmatpush.msra.mxu0 %v978
    %1241 = vmatpush.msra.mxu0 %v974
    %1242 = vmatpush.msra.mxu0 %v970
    %1243 = vmatpush.msra.mxu0 %v966
    %1244 = vmatpush.msra.mxu0 %v962
    %1245 = vmatpush.msra.mxu0 %v958
    %1246 = vmatpush.msra.mxu0 %v954
    %1247 = vmatpush.msra.mxu0 %v950
    %1248 = vmatpush.msra.mxu0 %v946
    %1249 = vmatpush.msra.mxu0 %v942
    %1250 = vmatmul.f32.gmra.mxu0 %v747
    %v1251 = vpop.f32.mrf.mxu0
    %v1252 = vadd.f32 %v1232, %v1251
    %1253 = vdwg.mxu0
    %1254 = vmatpush.msra.mxu0 %v811
    %1255 = vmatpush.msra.mxu0 %v807
    %1256 = vmatpush.msra.mxu0 %v803
    %1257 = vmatpush.msra.mxu0 %v799
    %1258 = vmatpush.msra.mxu0 %v795
    %1259 = vmatpush.msra.mxu0 %v791
    %1260 = vmatpush.msra.mxu0 %v787
    %1261 = vmatpush.msra.mxu0 %v783
    %1262 = vmatpush.msra.mxu0 %v779
    %1263 = vmatpush.msra.mxu0 %v775
    %1264 = vmatpush.msra.mxu0 %v771
    %1265 = vmatpush.msra.mxu0 %v767
    %1266 = vmatpush.msra.mxu0 %v763
    %1267 = vmatpush.msra.mxu0 %v759
    %1268 = vmatpush.msra.mxu0 %v755
    %1269 = vmatpush.msra.mxu0 %v751
    %1270 = vmatmul.f32.gmra.mxu0 %v744
    %v1271 = vpop.f32.mrf.mxu0
    %v1272 = vadd.f32 %v1009, %v1271
    %1273 = vdwg.mxu0
    %1274 = vmatpush.msra.mxu0 %v875
    %1275 = vmatpush.msra.mxu0 %v871
    %1276 = vmatpush.msra.mxu0 %v867
    %1277 = vmatpush.msra.mxu0 %v863
    %1278 = vmatpush.msra.mxu0 %v859
    %1279 = vmatpush.msra.mxu0 %v855
    %1280 = vmatpush.msra.mxu0 %v851
    %1281 = vmatpush.msra.mxu0 %v847
    %1282 = vmatpush.msra.mxu0 %v843
    %1283 = vmatpush.msra.mxu0 %v839
    %1284 = vmatpush.msra.mxu0 %v835
    %1285 = vmatpush.msra.mxu0 %v831
    %1286 = vmatpush.msra.mxu0 %v827
    %1287 = vmatpush.msra.mxu0 %v823
    %1288 = vmatpush.msra.mxu0 %v819
    %1289 = vmatpush.msra.mxu0 %v815
    %1290 = vmatmul.f32.gmra.mxu0 %v745
    %v1291 = vpop.f32.mrf.mxu0
    %v1292 = vadd.f32 %v1272, %v1291
    %1293 = vdwg.mxu0
    %1294 = vmatpush.msra.mxu0 %v939
    %1295 = vmatpush.msra.mxu0 %v935
    %1296 = vmatpush.msra.mxu0 %v931
    %1297 = vmatpush.msra.mxu0 %v927
    %1298 = vmatpush.msra.mxu0 %v923
    %1299 = vmatpush.msra.mxu0 %v919
    %1300 = vmatpush.msra.mxu0 %v915
    %1301 = vmatpush.msra.mxu0 %v911
    %1302 = vmatpush.msra.mxu0 %v907
    %1303 = vmatpush.msra.mxu0 %v903
    %1304 = vmatpush.msra.mxu0 %v899
    %1305 = vmatpush.msra.mxu0 %v895
    %1306 = vmatpush.msra.mxu0 %v891
    %1307 = vmatpush.msra.mxu0 %v887
    %1308 = vmatpush.msra.mxu0 %v883
    %1309 = vmatpush.msra.mxu0 %v879
    %1310 = vmatmul.f32.gmra.mxu0 %v746
    %v1311 = vpop.f32.mrf.mxu0
    %v1312 = vadd.f32 %v1292, %v1311
    %1313 = vdwg.mxu0
    %1314 = vmatpush.msra.mxu0 %v1003
    %1315 = vmatpush.msra.mxu0 %v999
    %1316 = vmatpush.msra.mxu0 %v995
    %1317 = vmatpush.msra.mxu0 %v991
    %1318 = vmatpush.msra.mxu0 %v987
    %1319 = vmatpush.msra.mxu0 %v983
    %1320 = vmatpush.msra.mxu0 %v979
    %1321 = vmatpush.msra.mxu0 %v975
    %1322 = vmatpush.msra.mxu0 %v971
    %1323 = vmatpush.msra.mxu0 %v967
    %1324 = vmatpush.msra.mxu0 %v963
    %1325 = vmatpush.msra.mxu0 %v959
    %1326 = vmatpush.msra.mxu0 %v955
    %1327 = vmatpush.msra.mxu0 %v951
    %1328 = vmatpush.msra.mxu0 %v947
    %1329 = vmatpush.msra.mxu0 %v943
    %1330 = vmatmul.f32.gmra.mxu0 %v747
    %v1331 = vpop.f32.mrf.mxu0
    %v1332 = vadd.f32 %v1312, %v1331
    %1333 = vdwg.mxu0
    %1334 = vst [vmem:[%s7] sm:$0xff] %v1092
    %1335 = vst [vmem:[%s7 + $0x8] sm:$0xff] %v1172
    %1336 = vst [vmem:[%s7 + $0x10] sm:$0xff] %v1252
    %1337 = vst [vmem:[%s7 + $0x18] sm:$0xff] %v1332
    // Predicated region
    $region42: #{mlp_predictor.1} parent=1 // pred_check
      _
    $region43: #{mlp_predictor.1} parent=1 // pred_check_branch
      %1339 = sbr.rel (0) target = $region45
    $region44: #{mlp_predictor.1} parent=1 // pred_region
      _
    $region45: #{mlp_predictor.1} parent=1 // pred_fallthru
      _
    // Predicated region
    $region46: #{mlp_predictor.1} parent=1 // pred_check
      _
    $region47: #{mlp_predictor.1} parent=1 // pred_check_branch
      %1341 = sbr.rel (0) target = $region49
    $region48: #{mlp_predictor.1} parent=1 // pred_region
      _
    $region49: #{mlp_predictor.1} parent=1 // pred_fallthru
      _
    %1342 = vsyncpa [#allocation3], 1
    %1343 = vsyncpa [#allocation5], 1

</llo_original>
